<compile_context>
chip_gen: v7x
topology: tpu7x:2x2x1
jax: 0.10.0
libtpu: 0.0.40
codegen_flags: <defaults>
</compile_context>

<pallas_src>
import functools

import jax
import jax.numpy as jnp
import numpy as np
from jax import lax
from jax.experimental import pallas as pl
from jax.experimental.pallas import tpu as pltpu


def _temporal_block_kernel(x_ref, w1_ref, b1_ref, w2_ref, b2_ref, wd_ref, bd_ref,
                           out_ref, xbuf_ref, h1buf_ref,
                           *, TL, K, dilation, pad, Cin, Cout):
    """One (batch, time-tile) step; channels on sublanes, time on lanes.

    x_ref   : (1, Cin, TL)        current input tile (bf16 in HBM)
    w1_ref  : (K, Cout, Cin)      conv1 taps (weight-norm folded)
    w2_ref  : (K, Cout, Cout)     conv2 taps (weight-norm folded)
    wd_ref  : (Cout, Cin)         1x1 downsample weight
    b*_ref  : (Cout, 1)           biases (f32)
    out_ref : (1, Cout, TL)
    xbuf_ref : (Cin,  TL + pad)   scratch: [carried x halo | current x tile]
    h1buf_ref: (Cout, TL + pad)   scratch: [carried h1 halo | current h1]
    Column c of a *buf corresponds to time  j*TL - pad + c.
    """
    j = pl.program_id(1)

    # First tile of each batch row: zero halos == the causal zero padding for
    # conv1 (x halo) and conv2 (h1 halo).  No per-step iota/where mask needed.
    @pl.when(j == 0)
    def _init():
        xbuf_ref[:, :pad] = jnp.zeros((Cin, pad), xbuf_ref.dtype)
        h1buf_ref[:, :pad] = jnp.zeros((Cout, pad), h1buf_ref.dtype)

    x_blk = x_ref[0]                                   # (Cin, TL), bf16
    xbuf_ref[:, pad:] = x_blk

    # ---- conv1 (dilated causal) as K lane-shifted matmuls, contraction = Cin.
    # bf16 operands, f32 accumulation on the MXU.
    acc1 = jnp.dot(w1_ref[0], xbuf_ref[:, :TL], preferred_element_type=jnp.float32)
    for k in range(1, K):
        acc1 = acc1 + jnp.dot(w1_ref[k],
                              xbuf_ref[:, k * dilation:k * dilation + TL],
                              preferred_element_type=jnp.float32)
    h1 = jnp.maximum(acc1 + b1_ref[...], 0.0)          # (Cout, TL), f32
    # dropout1: identity at inference time.
    # TODO(synk): training-mode dropout (Bernoulli mask via pltpu.prng_*) not implemented.

    h1buf_ref[:, pad:] = h1.astype(h1buf_ref.dtype)

    # ---- conv2 (dilated causal): same K-tap accumulation (no im2col concat).
    acc2 = jnp.dot(w2_ref[0], h1buf_ref[:, :TL], preferred_element_type=jnp.float32)
    for k in range(1, K):
        acc2 = acc2 + jnp.dot(w2_ref[k],
                              h1buf_ref[:, k * dilation:k * dilation + TL],
                              preferred_element_type=jnp.float32)
    h2 = jnp.maximum(acc2 + b2_ref[...], 0.0)          # (Cout, TL), f32
    # dropout2: identity at inference time.

    # ---- residual path (1x1 conv downsample) + final relu ---------------------
    res = jnp.dot(wd_ref[...], x_blk, preferred_element_type=jnp.float32) + bd_ref[...]
    out_ref[0] = jnp.maximum(h2 + res, 0.0).astype(out_ref.dtype)

    # Carry the last `pad` columns of this tile as the next tile's halo.
    xbuf_ref[:, :pad] = xbuf_ref[:, TL:TL + pad]
    h1buf_ref[:, :pad] = h1buf_ref[:, TL:TL + pad]


def _pick_time_tile(L, B):
    # Prefer the biggest lane-dense tile (amortizes per-step overhead, fills the
    # 256-wide MXU lane dim on v6e/v7x), but keep B*nL >= 4 total grid steps so
    # double-buffering stays alive and v7x's two TensorCores are both fed
    # (batch is the parallel axis).  Capped at 2048: live activation set stays
    # comfortably under 64 vregs without inner chunking at these channel counts.
    # TODO(synk): for much larger tiles, chunk inside the tile with lax.fori_loop.
    candidates = (2048, 1024, 512, 256, 128)
    for min_steps in (4, 2, 1):
        for tl in candidates:
            if L % tl == 0 and B * (L // tl) >= min_steps:
                return tl
    return L


@functools.partial(jax.jit, static_argnames=("kernel_size", "dilation", "time_tile"))
def temporal_block(x_ncl, w1, b1, w2, b2, wd, bd, *, kernel_size, dilation,
                   time_tile=None):
    """x_ncl: (B, Cin, L) bf16 (or f32); weights pre-arranged in kernel layout."""
    B, Cin, L = x_ncl.shape
    K = kernel_size
    pad = (K - 1) * dilation
    Cout = w1.shape[1]
    io_dtype = x_ncl.dtype

    TL = _pick_time_tile(L, B) if time_tile is None else time_tile
    assert L % TL == 0, "time_tile must divide L"
    nL = L // TL

    kernel = functools.partial(_temporal_block_kernel, TL=TL, K=K,
                               dilation=dilation, pad=pad, Cin=Cin, Cout=Cout)

    flops = 2 * B * L * (K * Cin * Cout + K * Cout * Cout + Cin * Cout)
    bytes_accessed = (x_ncl.size * x_ncl.dtype.itemsize
                      + B * Cout * L * jnp.dtype(io_dtype).itemsize
                      + sum(a.size * a.dtype.itemsize
                            for a in (w1, b1, w2, b2, wd, bd)))

    out = pl.pallas_call(
        kernel,
        out_shape=jax.ShapeDtypeStruct((B, Cout, L), io_dtype),
        grid_spec=pltpu.PrefetchScalarGridSpec(
            num_scalar_prefetch=0,
            grid=(B, nL),
            in_specs=[
                pl.BlockSpec((1, Cin, TL), lambda b, j: (b, 0, j)),       # x tile
                pl.BlockSpec((K, Cout, Cin), lambda b, j: (0, 0, 0)),     # w1 taps
                pl.BlockSpec((Cout, 1), lambda b, j: (0, 0)),             # b1
                pl.BlockSpec((K, Cout, Cout), lambda b, j: (0, 0, 0)),    # w2 taps
                pl.BlockSpec((Cout, 1), lambda b, j: (0, 0)),             # b2
                pl.BlockSpec((Cout, Cin), lambda b, j: (0, 0)),           # wd
                pl.BlockSpec((Cout, 1), lambda b, j: (0, 0)),             # bd
            ],
            out_specs=pl.BlockSpec((1, Cout, TL), lambda b, j: (b, 0, j)),
            scratch_shapes=[
                pltpu.VMEM((Cin, TL + pad), io_dtype),    # x slab: halo | tile
                pltpu.VMEM((Cout, TL + pad), io_dtype),   # h1 slab: halo | h1
            ],
        ),
        compiler_params=pltpu.CompilerParams(
            # Batch is independent -> shard across v7x's two TensorCores; the
            # time axis carries the causal halo in scratch so it is sequential.
            dimension_semantics=("parallel", "arbitrary"),
            # Per-step VMEM is tiny (<100 KiB) even at TL=2048; 32 MiB leaves
            # headroom on every generation (v5e/v6e 128 MiB, v7x 64 MiB).
            vmem_limit_bytes=32 * 1024 * 1024),
        cost_estimate=pl.CostEstimate(flops=flops, transcendentals=0,
                                      bytes_accessed=bytes_accessed),
    )(x_ncl, w1, b1, w2, b2, wd, bd)
    return out


def _weight_norm(v, g):
    """PyTorch weight_norm with dim=0: norm over (in_channels, kernel) dims."""
    norm = jnp.sqrt(jnp.sum(v * v, axis=(1, 2), keepdims=True))
    return g[:, None, None] * v / norm


def _reference(x_ncl, w1_oik, b1, w2_oik, b2, wd_oik, bd, *, dilation, pad):
    """Pure-JAX f32 reference matching the PyTorch forward (NCL layout)."""
    dn = ("NCH", "OIH", "NCH")

    def causal_conv(x, w, b, d, p):
        y = lax.conv_general_dilated(x, w, window_strides=(1,), padding=[(p, p)],
                                     rhs_dilation=(d,), dimension_numbers=dn,
                                     precision=lax.Precision.HIGHEST)
        y = y[:, :, :y.shape[2] - p]                     # Chomp1d
        return y + b[None, :, None]

    h1 = jnp.maximum(causal_conv(x_ncl, w1_oik, b1, dilation, pad), 0.0)
    h2 = jnp.maximum(causal_conv(h1, w2_oik, b2, dilation, pad), 0.0)
    res = lax.conv_general_dilated(x_ncl, wd_oik, (1,), [(0, 0)],
                                   dimension_numbers=dn,
                                   precision=lax.Precision.HIGHEST) + bd[None, :, None]
    return jnp.maximum(h2 + res, 0.0)


if __name__ == "__main__":
    # Module config: n_inputs=4, n_outputs=8, kernel_size=3, stride=1,
    # dilation=2, padding=(kernel_size-1)*dilation=4, dropout=0.2 (inactive).
    B, Cin, Cout, L = 2, 4, 8, 2048      # picker -> TL=1024, grid=(2,2): halo carry exercised
    K, dilation = 3, 2
    pad = (K - 1) * dilation

    key = jax.random.PRNGKey(0)
    ks = jax.random.split(key, 9)

    # Deterministic synthetic parameters (PyTorch Conv1d weight layout (O, I, K)).
    v1 = 0.01 * jax.random.normal(ks[0], (Cout, Cin, K), jnp.float32)
    g1 = 1.0 + 0.1 * jax.random.normal(ks[1], (Cout,), jnp.float32)
    b1 = 0.05 * jax.random.normal(ks[2], (Cout,), jnp.float32)
    v2 = 0.01 * jax.random.normal(ks[3], (Cout, Cout, K), jnp.float32)
    g2 = 1.0 + 0.1 * jax.random.normal(ks[4], (Cout,), jnp.float32)
    b2 = 0.05 * jax.random.normal(ks[5], (Cout,), jnp.float32)
    wd_oik = 0.01 * jax.random.normal(ks[6], (Cout, Cin, 1), jnp.float32)   # no weight norm
    bd = 0.05 * jax.random.normal(ks[7], (Cout,), jnp.float32)

    # weight_norm folded into effective conv weights (glue).
    w1_oik = _weight_norm(v1, g1)                       # (Cout, Cin, K)
    w2_oik = _weight_norm(v2, g2)                       # (Cout, Cout, K)

    # Kernel layouts: per-tap (K, Cout, Cin/Cout); 1x1 (Cout, Cin); biases (Cout, 1).
    # Weights/activations stored bf16 in HBM (bf16 MXU operands, f32 accumulation).
    w1_k = jnp.transpose(w1_oik, (2, 0, 1)).astype(jnp.bfloat16)
    w2_k = jnp.transpose(w2_oik, (2, 0, 1)).astype(jnp.bfloat16)
    wd_k = wd_oik[:, :, 0].astype(jnp.bfloat16)
    b1_k, b2_k, bd_k = b1[:, None], b2[:, None], bd[:, None]       # f32

    x = jax.random.normal(ks[8], (B, Cin, L), jnp.float32).astype(jnp.bfloat16)

    out = temporal_block(x, w1_k, b1_k, w2_k, b2_k, wd_k, bd_k,
                         kernel_size=K, dilation=dilation)
    out = jax.block_until_ready(out)

    ref = _reference(x.astype(jnp.float32), w1_oik, b1, w2_oik, b2, wd_oik, bd,
                     dilation=dilation, pad=pad)
    # Tolerance loosened for bf16 HBM I/O / bf16 MXU operands (f32 reference).
    np.testing.assert_allclose(np.asarray(out.astype(jnp.float32)), np.asarray(ref),
                               rtol=5e-2, atol=5e-2)
    assert out.shape == (B, Cout, L)
    print("KERNEL_OK")
</pallas_src>

<mosaic_0001>
module attributes {stable_mosaic.version = 11 : i64} {
  func.func @_temporal_block_kernel(%arg0: i32, %arg1: i32, %arg2: memref<1x4x1024xbf16, #tpu.memory_space<vmem>>, %arg3: memref<3x8x4xbf16, #tpu.memory_space<vmem>>, %arg4: memref<8x1xf32, #tpu.memory_space<vmem>>, %arg5: memref<3x8x8xbf16, #tpu.memory_space<vmem>>, %arg6: memref<8x1xf32, #tpu.memory_space<vmem>>, %arg7: memref<8x4xbf16, #tpu.memory_space<vmem>>, %arg8: memref<8x1xf32, #tpu.memory_space<vmem>>, %arg9: memref<1x8x1024xbf16, #tpu.memory_space<vmem>>, %arg10: memref<4x1028xbf16, #tpu.memory_space<vmem>>, %arg11: memref<8x1028xbf16, #tpu.memory_space<vmem>>) attributes {dimension_semantics = [#tpu.dimension_semantics<parallel>, #tpu.dimension_semantics<arbitrary>], iteration_bounds = array<i64: 2, 2>, scalar_prefetch = 0 : i64, scratch_operands = 2 : i64, tpu.core_type = #tpu.core_type<tc>, window_params = [{transform_indices = @transform_0, window_bounds = array<i64: 1, 4, 1024>}, {pipeline_mode = #tpu.pipeline_mode<synchronous>, transform_indices = @transform_1, window_bounds = array<i64: 3, 8, 4>}, {pipeline_mode = #tpu.pipeline_mode<synchronous>, transform_indices = @transform_2, window_bounds = array<i64: 8, 1>}, {pipeline_mode = #tpu.pipeline_mode<synchronous>, transform_indices = @transform_3, window_bounds = array<i64: 3, 8, 8>}, {pipeline_mode = #tpu.pipeline_mode<synchronous>, transform_indices = @transform_4, window_bounds = array<i64: 8, 1>}, {pipeline_mode = #tpu.pipeline_mode<synchronous>, transform_indices = @transform_5, window_bounds = array<i64: 8, 4>}, {pipeline_mode = #tpu.pipeline_mode<synchronous>, transform_indices = @transform_6, window_bounds = array<i64: 8, 1>}, {transform_indices = @transform_7, window_bounds = array<i64: 1, 8, 1024>}]} {
    %c0_i32 = arith.constant 0 : i32
    %0 = arith.cmpi eq, %arg1, %c0_i32 : i32
    %1 = arith.extui %0 : i1 to i32
    %c0_i32_0 = arith.constant 0 : i32
    %2 = arith.cmpi ne, %1, %c0_i32_0 : i32
    scf.if %2 {
      %cst_61 = arith.constant 0.000000e+00 : bf16
      %62 = vector.broadcast %cst_61 : bf16 to vector<4x4xbf16>
      %c0_62 = arith.constant 0 : index
      %c0_63 = arith.constant 0 : index
      %63 = vector.load %arg10[%c0_62, %c0_63] : memref<4x1028xbf16, #tpu.memory_space<vmem>>, vector<4x4xbf16>
      tpu.vector_store %arg10[%c0_62, %c0_63], %62 {strides = array<i32>} : memref<4x1028xbf16, #tpu.memory_space<vmem>>, vector<4x4xbf16>,
      %cst_64 = arith.constant 0.000000e+00 : bf16
      %64 = vector.broadcast %cst_64 : bf16 to vector<8x4xbf16>
      %c0_65 = arith.constant 0 : index
      %c0_66 = arith.constant 0 : index
      %65 = vector.load %arg11[%c0_65, %c0_66] : memref<8x1028xbf16, #tpu.memory_space<vmem>>, vector<8x4xbf16>
      tpu.vector_store %arg11[%c0_65, %c0_66], %64 {strides = array<i32>} : memref<8x1028xbf16, #tpu.memory_space<vmem>>, vector<8x4xbf16>,
    } else {
    }
    %c0 = arith.constant 0 : index
    %c0_1 = arith.constant 0 : index
    %c0_2 = arith.constant 0 : index
    %3 = vector.load %arg2[%c0, %c0_1, %c0_2] : memref<1x4x1024xbf16, #tpu.memory_space<vmem>>, vector<1x4x1024xbf16>
    %4 = vector.shape_cast %3 : vector<1x4x1024xbf16> to vector<4x1024xbf16>
    %c0_3 = arith.constant 0 : index
    %c4 = arith.constant 4 : index
    %5 = vector.load %arg10[%c0_3, %c4] : memref<4x1028xbf16, #tpu.memory_space<vmem>>, vector<4x1024xbf16>
    tpu.vector_store %arg10[%c0_3, %c4], %4 {strides = array<i32>} : memref<4x1028xbf16, #tpu.memory_space<vmem>>, vector<4x1024xbf16>,
    %c0_4 = arith.constant 0 : index
    %c0_5 = arith.constant 0 : index
    %c0_6 = arith.constant 0 : index
    %6 = vector.load %arg3[%c0_4, %c0_5, %c0_6] : memref<3x8x4xbf16, #tpu.memory_space<vmem>>, vector<1x8x4xbf16>
    %7 = vector.shape_cast %6 : vector<1x8x4xbf16> to vector<8x4xbf16>
    %c0_7 = arith.constant 0 : index
    %c0_8 = arith.constant 0 : index
    %8 = vector.load %arg10[%c0_7, %c0_8] : memref<4x1028xbf16, #tpu.memory_space<vmem>>, vector<4x1024xbf16>
    %cst = arith.constant dense<0.000000e+00> : vector<8x1024xf32>
    %9 = tpu.matmul %7, %8, %cst {dimension_numbers = #tpu.dot_dimension_numbers<[1], [0], [0], [1], [0, 0, 1, 1], [], []>} : vector<8x4xbf16>, vector<4x1024xbf16>, vector<8x1024xf32> -> vector<8x1024xf32>
    %c1 = arith.constant 1 : index
    %c0_9 = arith.constant 0 : index
    %c0_10 = arith.constant 0 : index
    %10 = vector.load %arg3[%c1, %c0_9, %c0_10] : memref<3x8x4xbf16, #tpu.memory_space<vmem>>, vector<1x8x4xbf16>
    %11 = vector.shape_cast %10 : vector<1x8x4xbf16> to vector<8x4xbf16>
    %c0_11 = arith.constant 0 : index
    %c2 = arith.constant 2 : index
    %12 = vector.load %arg10[%c0_11, %c2] : memref<4x1028xbf16, #tpu.memory_space<vmem>>, vector<4x1024xbf16>
    %cst_12 = arith.constant dense<0.000000e+00> : vector<8x1024xf32>
    %13 = tpu.matmul %11, %12, %cst_12 {dimension_numbers = #tpu.dot_dimension_numbers<[1], [0], [0], [1], [0, 0, 1, 1], [], []>} : vector<8x4xbf16>, vector<4x1024xbf16>, vector<8x1024xf32> -> vector<8x1024xf32>
    %14 = arith.addf %9, %13 : vector<8x1024xf32>
    %c2_13 = arith.constant 2 : index
    %c0_14 = arith.constant 0 : index
    %c0_15 = arith.constant 0 : index
    %15 = vector.load %arg3[%c2_13, %c0_14, %c0_15] : memref<3x8x4xbf16, #tpu.memory_space<vmem>>, vector<1x8x4xbf16>
    %16 = vector.shape_cast %15 : vector<1x8x4xbf16> to vector<8x4xbf16>
    %c0_16 = arith.constant 0 : index
    %c4_17 = arith.constant 4 : index
    %17 = vector.load %arg10[%c0_16, %c4_17] : memref<4x1028xbf16, #tpu.memory_space<vmem>>, vector<4x1024xbf16>
    %cst_18 = arith.constant dense<0.000000e+00> : vector<8x1024xf32>
    %18 = tpu.matmul %16, %17, %cst_18 {dimension_numbers = #tpu.dot_dimension_numbers<[1], [0], [0], [1], [0, 0, 1, 1], [], []>} : vector<8x4xbf16>, vector<4x1024xbf16>, vector<8x1024xf32> -> vector<8x1024xf32>
    %19 = arith.addf %14, %18 : vector<8x1024xf32>
    %c0_19 = arith.constant 0 : index
    %c0_20 = arith.constant 0 : index
    %20 = vector.load %arg4[%c0_19, %c0_20] : memref<8x1xf32, #tpu.memory_space<vmem>>, vector<8x1xf32>
    %21 = vector.broadcast %20 : vector<8x1xf32> to vector<8x1024xf32>
    %22 = arith.addf %19, %21 : vector<8x1024xf32>
    %cst_21 = arith.constant 0.000000e+00 : f32
    %23 = vector.broadcast %cst_21 : f32 to vector<8x1024xf32>
    %24 = arith.maximumf %22, %23 : vector<8x1024xf32>
    %25 = arith.truncf %24 : vector<8x1024xf32> to vector<8x1024xbf16>
    %c0_22 = arith.constant 0 : index
    %c4_23 = arith.constant 4 : index
    %26 = vector.load %arg11[%c0_22, %c4_23] : memref<8x1028xbf16, #tpu.memory_space<vmem>>, vector<8x1024xbf16>
    tpu.vector_store %arg11[%c0_22, %c4_23], %25 {strides = array<i32>} : memref<8x1028xbf16, #tpu.memory_space<vmem>>, vector<8x1024xbf16>,
    %c0_24 = arith.constant 0 : index
    %c0_25 = arith.constant 0 : index
    %c0_26 = arith.constant 0 : index
    %27 = vector.load %arg5[%c0_24, %c0_25, %c0_26] : memref<3x8x8xbf16, #tpu.memory_space<vmem>>, vector<1x8x8xbf16>
    %28 = vector.shape_cast %27 : vector<1x8x8xbf16> to vector<8x8xbf16>
    %c0_27 = arith.constant 0 : index
    %c0_28 = arith.constant 0 : index
    %29 = vector.load %arg11[%c0_27, %c0_28] : memref<8x1028xbf16, #tpu.memory_space<vmem>>, vector<8x1024xbf16>
    %cst_29 = arith.constant dense<0.000000e+00> : vector<8x1024xf32>
    %30 = tpu.matmul %28, %29, %cst_29 {dimension_numbers = #tpu.dot_dimension_numbers<[1], [0], [0], [1], [0, 0, 1, 1], [], []>} : vector<8x8xbf16>, vector<8x1024xbf16>, vector<8x1024xf32> -> vector<8x1024xf32>
    %c1_30 = arith.constant 1 : index
    %c0_31 = arith.constant 0 : index
    %c0_32 = arith.constant 0 : index
    %31 = vector.load %arg5[%c1_30, %c0_31, %c0_32] : memref<3x8x8xbf16, #tpu.memory_space<vmem>>, vector<1x8x8xbf16>
    %32 = vector.shape_cast %31 : vector<1x8x8xbf16> to vector<8x8xbf16>
    %c0_33 = arith.constant 0 : index
    %c2_34 = arith.constant 2 : index
    %33 = vector.load %arg11[%c0_33, %c2_34] : memref<8x1028xbf16, #tpu.memory_space<vmem>>, vector<8x1024xbf16>
    %cst_35 = arith.constant dense<0.000000e+00> : vector<8x1024xf32>
    %34 = tpu.matmul %32, %33, %cst_35 {dimension_numbers = #tpu.dot_dimension_numbers<[1], [0], [0], [1], [0, 0, 1, 1], [], []>} : vector<8x8xbf16>, vector<8x1024xbf16>, vector<8x1024xf32> -> vector<8x1024xf32>
    %35 = arith.addf %30, %34 : vector<8x1024xf32>
    %c2_36 = arith.constant 2 : index
    %c0_37 = arith.constant 0 : index
    %c0_38 = arith.constant 0 : index
    %36 = vector.load %arg5[%c2_36, %c0_37, %c0_38] : memref<3x8x8xbf16, #tpu.memory_space<vmem>>, vector<1x8x8xbf16>
    %37 = vector.shape_cast %36 : vector<1x8x8xbf16> to vector<8x8xbf16>
    %c0_39 = arith.constant 0 : index
    %c4_40 = arith.constant 4 : index
    %38 = vector.load %arg11[%c0_39, %c4_40] : memref<8x1028xbf16, #tpu.memory_space<vmem>>, vector<8x1024xbf16>
    %cst_41 = arith.constant dense<0.000000e+00> : vector<8x1024xf32>
    %39 = tpu.matmul %37, %38, %cst_41 {dimension_numbers = #tpu.dot_dimension_numbers<[1], [0], [0], [1], [0, 0, 1, 1], [], []>} : vector<8x8xbf16>, vector<8x1024xbf16>, vector<8x1024xf32> -> vector<8x1024xf32>
    %40 = arith.addf %35, %39 : vector<8x1024xf32>
    %c0_42 = arith.constant 0 : index
    %c0_43 = arith.constant 0 : index
    %41 = vector.load %arg6[%c0_42, %c0_43] : memref<8x1xf32, #tpu.memory_space<vmem>>, vector<8x1xf32>
    %42 = vector.broadcast %41 : vector<8x1xf32> to vector<8x1024xf32>
    %43 = arith.addf %40, %42 : vector<8x1024xf32>
    %cst_44 = arith.constant 0.000000e+00 : f32
    %44 = vector.broadcast %cst_44 : f32 to vector<8x1024xf32>
    %45 = arith.maximumf %43, %44 : vector<8x1024xf32>
    %c0_45 = arith.constant 0 : index
    %c0_46 = arith.constant 0 : index
    %46 = vector.load %arg7[%c0_45, %c0_46] : memref<8x4xbf16, #tpu.memory_space<vmem>>, vector<8x4xbf16>
    %cst_47 = arith.constant dense<0.000000e+00> : vector<8x1024xf32>
    %47 = tpu.matmul %46, %4, %cst_47 {dimension_numbers = #tpu.dot_dimension_numbers<[1], [0], [0], [1], [0, 0, 1, 1], [], []>} : vector<8x4xbf16>, vector<4x1024xbf16>, vector<8x1024xf32> -> vector<8x1024xf32>
    %c0_48 = arith.constant 0 : index
    %c0_49 = arith.constant 0 : index
    %48 = vector.load %arg8[%c0_48, %c0_49] : memref<8x1xf32, #tpu.memory_space<vmem>>, vector<8x1xf32>
    %49 = vector.broadcast %48 : vector<8x1xf32> to vector<8x1024xf32>
    %50 = arith.addf %47, %49 : vector<8x1024xf32>
    %51 = arith.addf %45, %50 : vector<8x1024xf32>
    %cst_50 = arith.constant 0.000000e+00 : f32
    %52 = vector.broadcast %cst_50 : f32 to vector<8x1024xf32>
    %53 = arith.maximumf %51, %52 : vector<8x1024xf32>
    %54 = arith.truncf %53 : vector<8x1024xf32> to vector<8x1024xbf16>
    %c0_51 = arith.constant 0 : index
    %c0_52 = arith.constant 0 : index
    %c0_53 = arith.constant 0 : index
    %55 = vector.load %arg9[%c0_51, %c0_52, %c0_53] : memref<1x8x1024xbf16, #tpu.memory_space<vmem>>, vector<1x8x1024xbf16>
    %56 = vector.shape_cast %55 : vector<1x8x1024xbf16> to vector<8x1024xbf16>
    %57 = vector.shape_cast %54 : vector<8x1024xbf16> to vector<1x8x1024xbf16>
    tpu.vector_store %arg9[%c0_51, %c0_52, %c0_53], %57 {strides = array<i32>} : memref<1x8x1024xbf16, #tpu.memory_space<vmem>>, vector<1x8x1024xbf16>,
    %c0_54 = arith.constant 0 : index
    %c1024 = arith.constant 1024 : index
    %58 = vector.load %arg10[%c0_54, %c1024] : memref<4x1028xbf16, #tpu.memory_space<vmem>>, vector<4x4xbf16>
    %c0_55 = arith.constant 0 : index
    %c0_56 = arith.constant 0 : index
    %59 = vector.load %arg10[%c0_55, %c0_56] : memref<4x1028xbf16, #tpu.memory_space<vmem>>, vector<4x4xbf16>
    tpu.vector_store %arg10[%c0_55, %c0_56], %58 {strides = array<i32>} : memref<4x1028xbf16, #tpu.memory_space<vmem>>, vector<4x4xbf16>,
    %c0_57 = arith.constant 0 : index
    %c1024_58 = arith.constant 1024 : index
    %60 = vector.load %arg11[%c0_57, %c1024_58] : memref<8x1028xbf16, #tpu.memory_space<vmem>>, vector<8x4xbf16>
    %c0_59 = arith.constant 0 : index
    %c0_60 = arith.constant 0 : index
    %61 = vector.load %arg11[%c0_59, %c0_60] : memref<8x1028xbf16, #tpu.memory_space<vmem>>, vector<8x4xbf16>
    tpu.vector_store %arg11[%c0_59, %c0_60], %60 {strides = array<i32>} : memref<8x1028xbf16, #tpu.memory_space<vmem>>, vector<8x4xbf16>,
    return
  }
  func.func @transform_0(%arg0: i32, %arg1: i32) -> (i32, i32, i32) {
    %c0_i32 = arith.constant 0 : i32
    %c0_i32_0 = arith.constant 0 : i32
    return %arg0, %c0_i32, %arg1 : i32, i32, i32
  }
  func.func @transform_1(%arg0: i32, %arg1: i32) -> (i32, i32, i32) {
    %c0_i32 = arith.constant 0 : i32
    %c0_i32_0 = arith.constant 0 : i32
    %c0_i32_1 = arith.constant 0 : i32
    %c0_i32_2 = arith.constant 0 : i32
    return %c0_i32, %c0_i32_0, %c0_i32_1 : i32, i32, i32
  }
  func.func @transform_2(%arg0: i32, %arg1: i32) -> (i32, i32) {
    %c0_i32 = arith.constant 0 : i32
    %c0_i32_0 = arith.constant 0 : i32
    %c0_i32_1 = arith.constant 0 : i32
    return %c0_i32, %c0_i32_0 : i32, i32
  }
  func.func @transform_3(%arg0: i32, %arg1: i32) -> (i32, i32, i32) {
    %c0_i32 = arith.constant 0 : i32
    %c0_i32_0 = arith.constant 0 : i32
    %c0_i32_1 = arith.constant 0 : i32
    %c0_i32_2 = arith.constant 0 : i32
    return %c0_i32, %c0_i32_0, %c0_i32_1 : i32, i32, i32
  }
  func.func @transform_4(%arg0: i32, %arg1: i32) -> (i32, i32) {
    %c0_i32 = arith.constant 0 : i32
    %c0_i32_0 = arith.constant 0 : i32
    %c0_i32_1 = arith.constant 0 : i32
    return %c0_i32, %c0_i32_0 : i32, i32
  }
  func.func @transform_5(%arg0: i32, %arg1: i32) -> (i32, i32) {
    %c0_i32 = arith.constant 0 : i32
    %c0_i32_0 = arith.constant 0 : i32
    %c0_i32_1 = arith.constant 0 : i32
    return %c0_i32, %c0_i32_0 : i32, i32
  }
  func.func @transform_6(%arg0: i32, %arg1: i32) -> (i32, i32) {
    %c0_i32 = arith.constant 0 : i32
    %c0_i32_0 = arith.constant 0 : i32
    %c0_i32_1 = arith.constant 0 : i32
    return %c0_i32, %c0_i32_0 : i32, i32
  }
  func.func @transform_7(%arg0: i32, %arg1: i32) -> (i32, i32, i32) {
    %c0_i32 = arith.constant 0 : i32
    %c0_i32_0 = arith.constant 0 : i32
    return %arg0, %c0_i32, %arg1 : i32, i32, i32
  }
}

</mosaic_0001>

<llo_original>
// kernel: temporal_block.1
$region0: #{temporal_block.1}
  #allocation0 [shape = 'u32[]', space=smem, size = 0x4, offset = 0x4, fixed_abs, tag = 'smem constant byte address 0x4 - core index']
  #allocation1 [shape = 'u32[144,128]{1,0:T(1,128)}', space=vmem, size = 0x12000, scoped, tag = 'internal scratch']
  #allocation2 [shape = 'bf16[4,1028]{1,0:T(4,128)(2,1)}', space=vmem, size = 0x2400, scoped, tag = 'scratch operand']
  #allocation3 [shape = 'bf16[8,1028]{1,0:T(8,128)(2,1)}', space=vmem, size = 0x4800, scoped, tag = 'scratch operand']
  %s0 = inlined_call_operand.hbm [shape: bf16[2,4,2048], index: 0, kind: input, shape index: {}]
  %s1 = inlined_call_operand.vmem [shape: bf16[3,8,4], index: 1, kind: input, shape index: {}]
  %s2 = inlined_call_operand.vmem [shape: f32[8,1], index: 2, kind: input, shape index: {}]
  %s3 = inlined_call_operand.vmem [shape: bf16[3,8,8], index: 3, kind: input, shape index: {}]
  %s4 = inlined_call_operand.vmem [shape: f32[8,1], index: 4, kind: input, shape index: {}]
  %s5 = inlined_call_operand.vmem [shape: bf16[8,4], index: 5, kind: input, shape index: {}]
  %s6 = inlined_call_operand.vmem [shape: f32[8,1], index: 6, kind: input, shape index: {}]
  %s7 = inlined_call_operand.hbm [shape: bf16[2,8,2048], index: 7, kind: output, shape index: {}]
  %s8 = sld [smem:[#allocation0]]
  $region69: #{temporal_block.1} parent=0
    _
  %s10 = ssub.s32 1, %s8
  %s11 = scalar_select 0, %s10, %s8
  $region1: #{temporal_block.1} parent=0
    #allocation4 [shape = 'u8[16384]{0}', space=vmem, size = 0x4000, scoped, tag = 'input window, operand 0']
    #allocation5 [shape = 's32[2]{0}', space=sflag, size = 0x8, scoped, tag = 'scoped memory for temporal_block.1']
    #allocation6 [shape = 's32[2]{0}', space=sflag, size = 0x8, scoped, tag = 'scoped memory for temporal_block.1']
    #allocation7 [shape = 'u8[32768]{0}', space=vmem, size = 0x8000, scoped, tag = 'output window, operand 0']
    %12 = vsyncpa [#allocation5], 0
    %s13 = scalar_lea.sflag [#allocation5], 1
    %14 = vsyncpa %s13, 0
    %15 = vsyncpa [#allocation6], 0
    %s16 = scalar_lea.sflag [#allocation6], 1
    %17 = vsyncpa %s16, 0
    loop: start=0, step=1, limit=6
    $region2: #{temporal_block.1} parent=1 // loop_pre_header
      _
    $region3: #{temporal_block.1} parent=1 // loop_header
      %s19 = sphi 0, %s23
      %p20 = scmp.ge.s32.totalorder %s19, 6
      %s26 = sphi 0, %s38
      %s27 = sphi 0, %s34
      %s28 = sphi 0, %s26
      %s29 = sphi 0, %s27
      %s30 = sphi 0, %s28
      %s31 = sphi 0, %s29
      %s43 = sphi 0, %s45
      %s46 = sphi 0, %s43
      %s47 = sphi 0, %s46
      %s63 = sphi 0, %s47
      %s67 = sphi 0, %s67
      %s69 = sphi 0, %s67
      %s70 = sphi 0, %s69
      %s84 = sphi 0, %s70
      %s88 = sphi 0, %s88
      %s90 = sphi 0, %s88
      %s91 = sphi 0, %s90
      %s105 = sphi 0, %s91
      %s109 = sphi 0, %s109
      %s111 = sphi 0, %s109
      %s112 = sphi 0, %s111
      %s126 = sphi 0, %s112
      %s130 = sphi 0, %s130
      %s132 = sphi 0, %s130
      %s133 = sphi 0, %s132
      %s147 = sphi 0, %s133
      %s151 = sphi 0, %s151
      %s153 = sphi 0, %s151
      %s154 = sphi 0, %s153
      %s168 = sphi 0, %s154
      %s172 = sphi 0, %s172
      %s174 = sphi 0, %s172
      %s175 = sphi 0, %s174
      %s189 = sphi 0, %s175
      %s197 = sphi 0, %s199
      %s200 = sphi 0, %s197
      %s201 = sphi 0, %s200
      %s217 = sphi 0, %s201
    $region4: #{temporal_block.1} parent=1 // loop_header_branch
      %22 = sbr.rel (%p20) target = $region8
    $region5: #{temporal_block.1} parent=1 // loop_body
      %s24 = ssub.s32 %s19, 1
      %s25 = ssub.s32 %s19, 2
      %s32 = sadd.s32 1, %s27
      %p33 = scmp.ge.s32.totalorder %s32, 2
      %s34 = scalar_select %p33, 0, %s32
      %s35 = sadd.s32 1, %s26
      %s36 = scalar_select %p33, %s35, %s26
      %p37 = scmp.ge.s32.totalorder %s36, 2
      %s38 = scalar_select %p37, 0, %s36
      %s39 = ssub.s32 %s26, %s38
      %s40 = ssub.s32 %s27, %s34
      %s41 = sor.u32 %s39, %s40
      %p42 = scmp.eq.s32.totalorder %s41, 0
      %s44 = sadd.s32 %s43, 1
      %s45 = scalar_select %p42, %s43, %s44
      %p48 = pneg %p42
      %p49 = scmp.eq.s32.totalorder %s19, 3
      %p50 = por %p48, %p49
      %p51 = scmp.ne.s32.totalorder %s43, %s46
      %p52 = scmp.eq.s32.totalorder %s19, 0
      %p53 = por %p51, %p52
      %p54 = scmp.ne.s32.totalorder %s43, %s46
      %p55 = scmp.eq.s32.totalorder %s24, 3
      %p56 = por %p54, %p55
      %p57 = scmp.ne.s32.totalorder %s46, %s47
      %p58 = scmp.eq.s32.totalorder %s24, 0
      %p59 = por %p57, %p58
      %p60 = scmp.ne.s32.totalorder %s46, %s47
      %p61 = scmp.eq.s32.totalorder %s25, 3
      %p62 = por %p60, %p61
      %p64 = scmp.ne.s32.totalorder %s47, %s63
      %p65 = scmp.eq.s32.totalorder %s25, 0
      %p66 = por %p64, %p65
      %s68 = sadd.s32 %s67, 1
      %p71 = scmp.eq.s32.totalorder %s19, 3
      %p72 = scmp.ne.s32.totalorder %s67, %s69
      %p73 = scmp.eq.s32.totalorder %s19, 0
      %p74 = por %p72, %p73
      %p75 = scmp.ne.s32.totalorder %s67, %s69
      %p76 = scmp.eq.s32.totalorder %s24, 3
      %p77 = por %p75, %p76
      %p78 = scmp.ne.s32.totalorder %s69, %s70
      %p79 = scmp.eq.s32.totalorder %s24, 0
      %p80 = por %p78, %p79
      %p81 = scmp.ne.s32.totalorder %s69, %s70
      %p82 = scmp.eq.s32.totalorder %s25, 3
      %p83 = por %p81, %p82
      %p85 = scmp.ne.s32.totalorder %s70, %s84
      %p86 = scmp.eq.s32.totalorder %s25, 0
      %p87 = por %p85, %p86
      %s89 = sadd.s32 %s88, 1
      %p92 = scmp.eq.s32.totalorder %s19, 3
      %p93 = scmp.ne.s32.totalorder %s88, %s90
      %p94 = scmp.eq.s32.totalorder %s19, 0
      %p95 = por %p93, %p94
      %p96 = scmp.ne.s32.totalorder %s88, %s90
      %p97 = scmp.eq.s32.totalorder %s24, 3
      %p98 = por %p96, %p97
      %p99 = scmp.ne.s32.totalorder %s90, %s91
      %p100 = scmp.eq.s32.totalorder %s24, 0
      %p101 = por %p99, %p100
      %p102 = scmp.ne.s32.totalorder %s90, %s91
      %p103 = scmp.eq.s32.totalorder %s25, 3
      %p104 = por %p102, %p103
      %p106 = scmp.ne.s32.totalorder %s91, %s105
      %p107 = scmp.eq.s32.totalorder %s25, 0
      %p108 = por %p106, %p107
      %s110 = sadd.s32 %s109, 1
      %p113 = scmp.eq.s32.totalorder %s19, 3
      %p114 = scmp.ne.s32.totalorder %s109, %s111
      %p115 = scmp.eq.s32.totalorder %s19, 0
      %p116 = por %p114, %p115
      %p117 = scmp.ne.s32.totalorder %s109, %s111
      %p118 = scmp.eq.s32.totalorder %s24, 3
      %p119 = por %p117, %p118
      %p120 = scmp.ne.s32.totalorder %s111, %s112
      %p121 = scmp.eq.s32.totalorder %s24, 0
      %p122 = por %p120, %p121
      %p123 = scmp.ne.s32.totalorder %s111, %s112
      %p124 = scmp.eq.s32.totalorder %s25, 3
      %p125 = por %p123, %p124
      %p127 = scmp.ne.s32.totalorder %s112, %s126
      %p128 = scmp.eq.s32.totalorder %s25, 0
      %p129 = por %p127, %p128
      %s131 = sadd.s32 %s130, 1
      %p134 = scmp.eq.s32.totalorder %s19, 3
      %p135 = scmp.ne.s32.totalorder %s130, %s132
      %p136 = scmp.eq.s32.totalorder %s19, 0
      %p137 = por %p135, %p136
      %p138 = scmp.ne.s32.totalorder %s130, %s132
      %p139 = scmp.eq.s32.totalorder %s24, 3
      %p140 = por %p138, %p139
      %p141 = scmp.ne.s32.totalorder %s132, %s133
      %p142 = scmp.eq.s32.totalorder %s24, 0
      %p143 = por %p141, %p142
      %p144 = scmp.ne.s32.totalorder %s132, %s133
      %p145 = scmp.eq.s32.totalorder %s25, 3
      %p146 = por %p144, %p145
      %p148 = scmp.ne.s32.totalorder %s133, %s147
      %p149 = scmp.eq.s32.totalorder %s25, 0
      %p150 = por %p148, %p149
      %s152 = sadd.s32 %s151, 1
      %p155 = scmp.eq.s32.totalorder %s19, 3
      %p156 = scmp.ne.s32.totalorder %s151, %s153
      %p157 = scmp.eq.s32.totalorder %s19, 0
      %p158 = por %p156, %p157
      %p159 = scmp.ne.s32.totalorder %s151, %s153
      %p160 = scmp.eq.s32.totalorder %s24, 3
      %p161 = por %p159, %p160
      %p162 = scmp.ne.s32.totalorder %s153, %s154
      %p163 = scmp.eq.s32.totalorder %s24, 0
      %p164 = por %p162, %p163
      %p165 = scmp.ne.s32.totalorder %s153, %s154
      %p166 = scmp.eq.s32.totalorder %s25, 3
      %p167 = por %p165, %p166
      %p169 = scmp.ne.s32.totalorder %s154, %s168
      %p170 = scmp.eq.s32.totalorder %s25, 0
      %p171 = por %p169, %p170
      %s173 = sadd.s32 %s172, 1
      %p176 = scmp.eq.s32.totalorder %s19, 3
      %p177 = scmp.ne.s32.totalorder %s172, %s174
      %p178 = scmp.eq.s32.totalorder %s19, 0
      %p179 = por %p177, %p178
      %p180 = scmp.ne.s32.totalorder %s172, %s174
      %p181 = scmp.eq.s32.totalorder %s24, 3
      %p182 = por %p180, %p181
      %p183 = scmp.ne.s32.totalorder %s174, %s175
      %p184 = scmp.eq.s32.totalorder %s24, 0
      %p185 = por %p183, %p184
      %p186 = scmp.ne.s32.totalorder %s174, %s175
      %p187 = scmp.eq.s32.totalorder %s25, 3
      %p188 = por %p186, %p187
      %p190 = scmp.ne.s32.totalorder %s175, %s189
      %p191 = scmp.eq.s32.totalorder %s25, 0
      %p192 = por %p190, %p191
      %s193 = ssub.s32 %s26, %s38
      %s194 = ssub.s32 %s27, %s34
      %s195 = sor.u32 %s193, %s194
      %p196 = scmp.eq.s32.totalorder %s195, 0
      %s198 = sadd.s32 %s197, 1
      %s199 = scalar_select %p196, %s197, %s198
      %p202 = pneg %p196
      %p203 = scmp.eq.s32.totalorder %s19, 3
      %p204 = por %p202, %p203
      %p205 = scmp.ne.s32.totalorder %s197, %s200
      %p206 = scmp.eq.s32.totalorder %s19, 0
      %p207 = por %p205, %p206
      %p208 = scmp.ne.s32.totalorder %s197, %s200
      %p209 = scmp.eq.s32.totalorder %s24, 3
      %p210 = por %p208, %p209
      %p211 = scmp.ne.s32.totalorder %s200, %s201
      %p212 = scmp.eq.s32.totalorder %s24, 0
      %p213 = por %p211, %p212
      %p214 = scmp.ne.s32.totalorder %s200, %s201
      %p215 = scmp.eq.s32.totalorder %s25, 3
      %p216 = por %p214, %p215
      %p218 = scmp.ne.s32.totalorder %s201, %s217
      %p219 = scmp.eq.s32.totalorder %s25, 0
      %p220 = por %p218, %p219
      %p221 = scmp.le.s32.totalorder 1, %s19
      %p222 = scmp.lt.s32.totalorder %s19, 5
      %p223 = pnand %p221, %p222
      %p224 = pneg %p223
      // Predicated region
      $region9: #{temporal_block.1} parent=5 // pred_check
        _
      $region10: #{temporal_block.1} parent=5 // pred_check_branch
        %226 = sbr.rel (%p223) target = $region12
      $region11: #{temporal_block.1} parent=5 // pred_region
        %s227 = ssub.s32 %s19, 1
        // Predicated region
        $region13: #{temporal_block.1} parent=11 // pred_check
          %p228 = pneg %p80
        $region14: #{temporal_block.1} parent=11 // pred_check_branch
          %230 = sbr.rel (%p228) target = $region16
        $region15: #{temporal_block.1} parent=11 // pred_region
          _
        $region16: #{temporal_block.1} parent=11 // pred_fallthru
          _
        // Predicated region
        $region17: #{temporal_block.1} parent=11 // pred_check
          %p231 = pneg %p101
        $region18: #{temporal_block.1} parent=11 // pred_check_branch
          %233 = sbr.rel (%p231) target = $region20
        $region19: #{temporal_block.1} parent=11 // pred_region
          _
        $region20: #{temporal_block.1} parent=11 // pred_fallthru
          _
        // Predicated region
        $region21: #{temporal_block.1} parent=11 // pred_check
          %p234 = pneg %p122
        $region22: #{temporal_block.1} parent=11 // pred_check_branch
          %236 = sbr.rel (%p234) target = $region24
        $region23: #{temporal_block.1} parent=11 // pred_region
          _
        $region24: #{temporal_block.1} parent=11 // pred_fallthru
          _
        // Predicated region
        $region25: #{temporal_block.1} parent=11 // pred_check
          %p237 = pneg %p143
        $region26: #{temporal_block.1} parent=11 // pred_check_branch
          %239 = sbr.rel (%p237) target = $region28
        $region27: #{temporal_block.1} parent=11 // pred_region
          _
        $region28: #{temporal_block.1} parent=11 // pred_fallthru
          _
        // Predicated region
        $region29: #{temporal_block.1} parent=11 // pred_check
          %p240 = pneg %p164
        $region30: #{temporal_block.1} parent=11 // pred_check_branch
          %242 = sbr.rel (%p240) target = $region32
        $region31: #{temporal_block.1} parent=11 // pred_region
          _
        $region32: #{temporal_block.1} parent=11 // pred_fallthru
          _
        // Predicated region
        $region33: #{temporal_block.1} parent=11 // pred_check
          %p243 = pneg %p185
        $region34: #{temporal_block.1} parent=11 // pred_check_branch
          %245 = sbr.rel (%p243) target = $region36
        $region35: #{temporal_block.1} parent=11 // pred_region
          _
        $region36: #{temporal_block.1} parent=11 // pred_fallthru
          _
      $region12: #{temporal_block.1} parent=5 // pred_fallthru
        _
      %p246 = scmp.lt.s32.totalorder %s19, 4
      // Predicated region
      $region37: #{temporal_block.1} parent=5 // pred_check
        %p247 = pneg %p246
      $region38: #{temporal_block.1} parent=5 // pred_check_branch
        %249 = sbr.rel (%p247) target = $region40
      $region39: #{temporal_block.1} parent=5 // pred_region
        // Predicated region
        $region41: #{temporal_block.1} parent=39 // pred_check
          %p250 = pneg %p53
        $region42: #{temporal_block.1} parent=39 // pred_check_branch
          %252 = sbr.rel (%p250) target = $region44
        $region43: #{temporal_block.1} parent=39 // pred_region
          %s253 = sand.u32 %s43, 1
          %s254 = scalar_lea.sflag [#allocation5], %s253
          %s255 = sand.u32 %s43, 1
          %s256 = smul.addr %s255, 16
          %s257 = scalar_lea.vmem [#allocation4], %s256
          %s258 = smul.u32 8, %s27
          %s260 = ssub.s32 256, 256
          %261 = vsyncadd %s254, %s260
          %s262 = smul.addr %s26, 16
          %s263 = sadd.s32 %s258, %s262
          %s264 = smul.addr %s263, 32
          %s265 = scalar_lea.hbm %s0, %s264
          %s267 = sshll.u32 %s257, 4
          %s268 = int_to_ptr.vmem [resolvable:$true] %s267
          %270 = dma.hbm_to_vmem [thread:$0]  %s265, 256, %s268, %s254
        $region44: #{temporal_block.1} parent=39 // pred_fallthru
          _
      $region40: #{temporal_block.1} parent=5 // pred_fallthru
        _
      %p271 = scmp.le.s32.totalorder 1, %s19
      %p272 = scmp.lt.s32.totalorder %s19, 5
      %p273 = pnand %p271, %p272
      %p274 = pneg %p273
      // Predicated region
      $region45: #{temporal_block.1} parent=5 // pred_check
        _
      $region46: #{temporal_block.1} parent=5 // pred_check_branch
        %276 = sbr.rel (%p273) target = $region48
      $region47: #{temporal_block.1} parent=5 // pred_region
        %s277 = ssub.s32 %s19, 1
        %s278 = sand.u32 %s46, 1
        %s279 = scalar_lea.sflag [#allocation5], %s278
        %s280 = sand.u32 %s46, 1
        %s281 = smul.addr %s280, 16
        %s282 = scalar_lea.vmem [#allocation4], %s281
        // Predicated region
        $region49: #{temporal_block.1} parent=47 // pred_check
          %p283 = pneg %p59
        $region50: #{temporal_block.1} parent=47 // pred_check_branch
          %285 = sbr.rel (%p283) target = $region52
        $region51: #{temporal_block.1} parent=47 // pred_region
          %286 = dma.done %s279, 256
        $region52: #{temporal_block.1} parent=47 // pred_fallthru
          _
        %s287 = sand.u32 %s46, 1
        %s288 = scalar_lea.sflag [#allocation5], %s287
        %s289 = sand.u32 %s46, 1
        %s290 = smul.addr %s289, 16
        %s291 = scalar_lea.vmem [#allocation4], %s290
        %p292 = pneg %p59
        %p293 = pneg %p56
        %p294 = pneg %p80
        %p295 = pneg %p77
        %p296 = pneg %p101
        %p297 = pneg %p98
        %p298 = pneg %p122
        %p299 = pneg %p119
        %p300 = pneg %p143
        %p301 = pneg %p140
        %p302 = pneg %p164
        %p303 = pneg %p161
        %p304 = pneg %p185
        %p305 = pneg %p182
        %p306 = pneg %p213
        %p307 = pneg %p210
        %s308 = sand.u32 %s200, 1
        %s309 = scalar_lea.sflag [#allocation6], %s308
        %s310 = sand.u32 %s200, 1
        %s311 = smul.addr %s310, 32
        %s312 = scalar_lea.vmem [#allocation7], %s311
        %s313 = smul.u32 8, %s29
        %s314 = smul.u32 8, %s29
        %p316 = scmp.eq.s32.totalorder %s29, 0
        // Predicated region
        $region53: #{temporal_block.1} parent=47 // pred_check
          %p317 = pneg %p316
        $region54: #{temporal_block.1} parent=47 // pred_check_branch
          %319 = sbr.rel (%p317) target = $region56
        $region55: #{temporal_block.1} parent=47 // pred_region
          %vm320 = vcmask 25600
          %321 = vst.msk [vmem:[#allocation2] sm:$0x3] %vm320, 0
          %vm322 = vcmask 27648
          %323 = vst.msk [vmem:[#allocation3] sm:$0xf] %vm322, 0
        $region56: #{temporal_block.1} parent=47 // pred_fallthru
          _
        %v324 = vld [vmem:[%s282] sm:$0xff]
        %v325 = vld [vmem:[%s282 + $0x8] sm:$0xff]
        %328 = vrot.lane.b32.xlu0 %v324, 4
        %v329 = vpop.permute.xlu0 %328
        %330 = vrot.lane.b32.xlu0 %v325, 4
        %v331 = vpop.permute.xlu0 %330
        %v332 = vrot.slane %v329, 6
        %v333 = vrot.slane %v331, 6
        %vm334 = vcmask 31744
        %v335 = vsel %vm334, %v332, %v329
        %vm336 = vcmask 1041408
        %v337 = vsel %vm336, %v332, %v333
        %v338 = vsel %vm334, %v337, %v331
        %vm342 = vcmask 1041440
        %vm343 = vcmask 1043458
        %vm344 = vmor %vm343, %vm342
        %vm345 = vcmask 1045508
        %vm346 = vmor %vm345, %vm344
        %vm347 = vcmask 1047558
        %vm348 = vmor %vm347, %vm346
        %349 = vst.msk [vmem:[#allocation2] sm:$0xff] %vm348, %v335
        %350 = vst [vmem:[#allocation2 + $0x8] sm:$0xff] %v338
        %vm351 = vcmask 25600
        %352 = vst.msk [vmem:[#allocation2 + $0x10] sm:$0x3] %vm351, %v333
        %v353 = vld [vmem:[%s1] sm:$0xf]
        %v354 = vld [vmem:[#allocation2] sm:$0xff]
        %v355 = vld [vmem:[#allocation2 + $0x8] sm:$0xff]
        %s356 = scalar_lea.vmem %s1, 4
        %v357 = vld [vmem:[%s356] sm:$0xf]
        %v358 = vld [vmem:[#allocation2 + $0x10] sm:$0x3]
        %v362 = vcombine.high %v354, %v354
        %v364 = vunpack.c.l.s4 1983009808
        %v365 = vunpack.c.0.s8 %v364
        %v366 = vlaneseq
        %v367 = vshrl.u32 %v366, 7
        %v368 = vsub.s32 %v365, %v367
        %v369 = vrot.slane %v354, %v368
        %v371 = vunpack.c.l.s4 1983009808
        %v372 = vunpack.c.0.s8 %v371
        %v373 = vlaneseq
        %v374 = vshrl.u32 %v373, 7
        %v375 = vsub.s32 %v372, %v374
        %v376 = vrot.slane %v362, %v375
        %v377 = vcombine.high %v369, %v369
        %v378 = vcombine.high %v376, %v376
        %v379 = vcombine.high %v355, %v355
        %v381 = vunpack.c.l.s4 1983009808
        %v382 = vunpack.c.0.s8 %v381
        %v383 = vlaneseq
        %v384 = vshrl.u32 %v383, 7
        %v385 = vsub.s32 %v382, %v384
        %v386 = vrot.slane %v355, %v385
        %v388 = vunpack.c.l.s4 1983009808
        %v389 = vunpack.c.0.s8 %v388
        %v390 = vlaneseq
        %v391 = vshrl.u32 %v390, 7
        %v392 = vsub.s32 %v389, %v391
        %v393 = vrot.slane %v379, %v392
        %v394 = vcombine.high %v386, %v386
        %v395 = vcombine.high %v393, %v393
        %v397 = vunpack.c.l.s4 1983009808
        %v398 = vunpack.c.0.s8 %v397
        %v399 = vlaneseq
        %v400 = vshrl.u32 %v399, 7
        %v401 = vsub.s32 %v398, %v400
        %v402 = vrot.slane %v358, %v401
        %403 = vrot.lane.b32.xlu0 %v369, 126
        %v404 = vpop.permute.xlu0 %403
        %405 = vrot.lane.b32.xlu0 %v377, 126
        %v406 = vpop.permute.xlu0 %405
        %407 = vrot.lane.b32.xlu0 %v376, 126
        %v408 = vpop.permute.xlu0 %407
        %409 = vrot.lane.b32.xlu0 %v378, 126
        %v410 = vpop.permute.xlu0 %409
        %411 = vrot.lane.b32.xlu0 %v386, 126
        %v412 = vpop.permute.xlu0 %411
        %413 = vrot.lane.b32.xlu0 %v394, 126
        %v414 = vpop.permute.xlu0 %413
        %415 = vrot.lane.b32.xlu0 %v393, 126
        %v416 = vpop.permute.xlu0 %415
        %417 = vrot.lane.b32.xlu0 %v395, 126
        %v418 = vpop.permute.xlu0 %417
        %419 = vrot.lane.b32.xlu0 %v402, 126
        %v420 = vpop.permute.xlu0 %419
        %vm421 = vcmask 1031168
        %v422 = vsel %vm421, %v404, %v406
        %v423 = vsel %vm421, %v406, %v408
        %v424 = vsel %vm421, %v408, %v410
        %v425 = vsel %vm421, %v410, %v412
        %v426 = vsel %vm421, %v412, %v414
        %v427 = vsel %vm421, %v414, %v416
        %v428 = vsel %vm421, %v416, %v418
        %v429 = vsel %vm421, %v418, %v420
        %vm430 = vcmask 31744
        %v432 = vsel %vm430, %v357, 0
        %vm434 = vcmask 1041408
        %v436 = vsel %vm434, %v422, 0
        %v439 = vsel %vm434, %v423, 0
        %v442 = vsel %vm434, %v424, 0
        %v445 = vsel %vm434, %v425, 0
        %v448 = vsel %vm434, %v426, 0
        %v451 = vsel %vm434, %v427, 0
        %v454 = vsel %vm434, %v428, 0
        %v457 = vsel %vm434, %v429, 0
        %459 = vmatprep.subr.bf16.mxu0 %v439
        %460 = vmatpush1.bf16.msra.mxu0 %v436
        %461 = vmatprep.subr.bf16.mxu0 0
        %462 = vmatpush1.bf16.msra.mxu0 0
        %463 = vmatprep.subr.bf16.mxu0 0
        %464 = vmatpush1.bf16.msra.mxu0 0
        %465 = vmatprep.subr.bf16.mxu0 0
        %466 = vmatpush1.bf16.msra.mxu0 0
        %467 = vmatprep.subr.bf16.mxu0 0
        %468 = vmatpush1.bf16.msra.mxu0 0
        %469 = vmatprep.subr.bf16.mxu0 0
        %470 = vmatpush1.bf16.msra.mxu0 0
        %471 = vmatprep.subr.bf16.mxu0 0
        %472 = vmatpush1.bf16.msra.mxu0 0
        %473 = vmatprep.subr.bf16.mxu0 0
        %474 = vmatpush1.bf16.msra.mxu0 0
        %475 = vmatprep.subr.bf16.mxu0 0
        %476 = vmatpush1.bf16.msra.mxu0 0
        %477 = vmatprep.subr.bf16.mxu0 0
        %478 = vmatpush1.bf16.msra.mxu0 0
        %479 = vmatprep.subr.bf16.mxu0 0
        %480 = vmatpush1.bf16.msra.mxu0 0
        %481 = vmatprep.subr.bf16.mxu0 0
        %482 = vmatpush1.bf16.msra.mxu0 0
        %483 = vmatprep.subr.bf16.mxu0 0
        %484 = vmatpush1.bf16.msra.mxu0 0
        %485 = vmatprep.subr.bf16.mxu0 0
        %486 = vmatpush1.bf16.msra.mxu0 0
        %487 = vmatprep.subr.bf16.mxu0 0
        %488 = vmatpush1.bf16.msra.mxu0 0
        %489 = vmatprep.subr.bf16.mxu0 0
        %490 = vmatpush1.bf16.msra.mxu0 0
        %491 = vmatprep.mubr.bf16.mxu0 0
        %492 = vmatmul.mubr.bf16.gmra.mrb[0].mxu0 %v432
        %v493 = vpop.f32.mrb[0].mxu0
        %v494 = vadd.f32 0.0, %v493
        %v495 = vpop.f32.mrb[0].mxu0
        %v496 = vadd.f32 0.0, %v495
        %v497 = vpop.f32.mrb[0].mxu0
        %v498 = vpop.f32.mrb[0].mxu0
        %499 = vdwg.mxu0
        %500 = vmatprep.subr.bf16.mxu0 %v445
        %501 = vmatpush1.bf16.msra.mxu0 %v442
        %502 = vmatprep.subr.bf16.mxu0 0
        %503 = vmatpush1.bf16.msra.mxu0 0
        %504 = vmatprep.subr.bf16.mxu0 0
        %505 = vmatpush1.bf16.msra.mxu0 0
        %506 = vmatprep.subr.bf16.mxu0 0
        %507 = vmatpush1.bf16.msra.mxu0 0
        %508 = vmatprep.subr.bf16.mxu0 0
        %509 = vmatpush1.bf16.msra.mxu0 0
        %510 = vmatprep.subr.bf16.mxu0 0
        %511 = vmatpush1.bf16.msra.mxu0 0
        %512 = vmatprep.subr.bf16.mxu0 0
        %513 = vmatpush1.bf16.msra.mxu0 0
        %514 = vmatprep.subr.bf16.mxu0 0
        %515 = vmatpush1.bf16.msra.mxu0 0
        %516 = vmatprep.subr.bf16.mxu0 0
        %517 = vmatpush1.bf16.msra.mxu0 0
        %518 = vmatprep.subr.bf16.mxu0 0
        %519 = vmatpush1.bf16.msra.mxu0 0
        %520 = vmatprep.subr.bf16.mxu0 0
        %521 = vmatpush1.bf16.msra.mxu0 0
        %522 = vmatprep.subr.bf16.mxu0 0
        %523 = vmatpush1.bf16.msra.mxu0 0
        %524 = vmatprep.subr.bf16.mxu0 0
        %525 = vmatpush1.bf16.msra.mxu0 0
        %526 = vmatprep.subr.bf16.mxu0 0
        %527 = vmatpush1.bf16.msra.mxu0 0
        %528 = vmatprep.subr.bf16.mxu0 0
        %529 = vmatpush1.bf16.msra.mxu0 0
        %530 = vmatprep.subr.bf16.mxu0 0
        %531 = vmatpush1.bf16.msra.mxu0 0
        %532 = vmatprep.mubr.bf16.mxu0 0
        %533 = vmatmul.mubr.bf16.gmra.mrb[0].mxu0 %v432
        %v534 = vpop.f32.mrb[0].mxu0
        %v535 = vadd.f32 0.0, %v534
        %v536 = vpop.f32.mrb[0].mxu0
        %v537 = vadd.f32 0.0, %v536
        %v538 = vpop.f32.mrb[0].mxu0
        %v539 = vpop.f32.mrb[0].mxu0
        %540 = vdwg.mxu0
        %541 = vmatprep.subr.bf16.mxu0 %v451
        %542 = vmatpush1.bf16.msra.mxu0 %v448
        %543 = vmatprep.subr.bf16.mxu0 0
        %544 = vmatpush1.bf16.msra.mxu0 0
        %545 = vmatprep.subr.bf16.mxu0 0
        %546 = vmatpush1.bf16.msra.mxu0 0
        %547 = vmatprep.subr.bf16.mxu0 0
        %548 = vmatpush1.bf16.msra.mxu0 0
        %549 = vmatprep.subr.bf16.mxu0 0
        %550 = vmatpush1.bf16.msra.mxu0 0
        %551 = vmatprep.subr.bf16.mxu0 0
        %552 = vmatpush1.bf16.msra.mxu0 0
        %553 = vmatprep.subr.bf16.mxu0 0
        %554 = vmatpush1.bf16.msra.mxu0 0
        %555 = vmatprep.subr.bf16.mxu0 0
        %556 = vmatpush1.bf16.msra.mxu0 0
        %557 = vmatprep.subr.bf16.mxu0 0
        %558 = vmatpush1.bf16.msra.mxu0 0
        %559 = vmatprep.subr.bf16.mxu0 0
        %560 = vmatpush1.bf16.msra.mxu0 0
        %561 = vmatprep.subr.bf16.mxu0 0
        %562 = vmatpush1.bf16.msra.mxu0 0
        %563 = vmatprep.subr.bf16.mxu0 0
        %564 = vmatpush1.bf16.msra.mxu0 0
        %565 = vmatprep.subr.bf16.mxu0 0
        %566 = vmatpush1.bf16.msra.mxu0 0
        %567 = vmatprep.subr.bf16.mxu0 0
        %568 = vmatpush1.bf16.msra.mxu0 0
        %569 = vmatprep.subr.bf16.mxu0 0
        %570 = vmatpush1.bf16.msra.mxu0 0
        %571 = vmatprep.subr.bf16.mxu0 0
        %572 = vmatpush1.bf16.msra.mxu0 0
        %573 = vmatprep.mubr.bf16.mxu0 0
        %574 = vmatmul.mubr.bf16.gmra.mrb[0].mxu0 %v432
        %v575 = vpop.f32.mrb[0].mxu0
        %v576 = vadd.f32 0.0, %v575
        %v577 = vpop.f32.mrb[0].mxu0
        %v578 = vadd.f32 0.0, %v577
        %v579 = vpop.f32.mrb[0].mxu0
        %v580 = vpop.f32.mrb[0].mxu0
        %581 = vdwg.mxu0
        %582 = vmatprep.subr.bf16.mxu0 %v457
        %583 = vmatpush1.bf16.msra.mxu0 %v454
        %584 = vmatprep.subr.bf16.mxu0 0
        %585 = vmatpush1.bf16.msra.mxu0 0
        %586 = vmatprep.subr.bf16.mxu0 0
        %587 = vmatpush1.bf16.msra.mxu0 0
        %588 = vmatprep.subr.bf16.mxu0 0
        %589 = vmatpush1.bf16.msra.mxu0 0
        %590 = vmatprep.subr.bf16.mxu0 0
        %591 = vmatpush1.bf16.msra.mxu0 0
        %592 = vmatprep.subr.bf16.mxu0 0
        %593 = vmatpush1.bf16.msra.mxu0 0
        %594 = vmatprep.subr.bf16.mxu0 0
        %595 = vmatpush1.bf16.msra.mxu0 0
        %596 = vmatprep.subr.bf16.mxu0 0
        %597 = vmatpush1.bf16.msra.mxu0 0
        %598 = vmatprep.subr.bf16.mxu0 0
        %599 = vmatpush1.bf16.msra.mxu0 0
        %600 = vmatprep.subr.bf16.mxu0 0
        %601 = vmatpush1.bf16.msra.mxu0 0
        %602 = vmatprep.subr.bf16.mxu0 0
        %603 = vmatpush1.bf16.msra.mxu0 0
        %604 = vmatprep.subr.bf16.mxu0 0
        %605 = vmatpush1.bf16.msra.mxu0 0
        %606 = vmatprep.subr.bf16.mxu0 0
        %607 = vmatpush1.bf16.msra.mxu0 0
        %608 = vmatprep.subr.bf16.mxu0 0
        %609 = vmatpush1.bf16.msra.mxu0 0
        %610 = vmatprep.subr.bf16.mxu0 0
        %611 = vmatpush1.bf16.msra.mxu0 0
        %612 = vmatprep.subr.bf16.mxu0 0
        %613 = vmatpush1.bf16.msra.mxu0 0
        %614 = vmatprep.mubr.bf16.mxu0 0
        %615 = vmatmul.mubr.bf16.gmra.mrb[0].mxu0 %v432
        %v616 = vpop.f32.mrb[0].mxu0
        %v617 = vadd.f32 0.0, %v616
        %v618 = vpop.f32.mrb[0].mxu0
        %v619 = vadd.f32 0.0, %v618
        %v620 = vpop.f32.mrb[0].mxu0
        %v621 = vpop.f32.mrb[0].mxu0
        %622 = vdwg.mxu0
        %v624 = vsel %vm430, %v353, 0
        %v627 = vsel %vm434, %v369, 0
        %v630 = vsel %vm434, %v377, 0
        %v633 = vsel %vm434, %v376, 0
        %v636 = vsel %vm434, %v378, 0
        %v639 = vsel %vm434, %v386, 0
        %v642 = vsel %vm434, %v394, 0
        %v645 = vsel %vm434, %v393, 0
        %v648 = vsel %vm434, %v395, 0
        %650 = vmatprep.subr.bf16.mxu0 %v630
        %651 = vmatpush1.bf16.msra.mxu0 %v627
        %652 = vmatprep.subr.bf16.mxu0 0
        %653 = vmatpush1.bf16.msra.mxu0 0
        %654 = vmatprep.subr.bf16.mxu0 0
        %655 = vmatpush1.bf16.msra.mxu0 0
        %656 = vmatprep.subr.bf16.mxu0 0
        %657 = vmatpush1.bf16.msra.mxu0 0
        %658 = vmatprep.subr.bf16.mxu0 0
        %659 = vmatpush1.bf16.msra.mxu0 0
        %660 = vmatprep.subr.bf16.mxu0 0
        %661 = vmatpush1.bf16.msra.mxu0 0
        %662 = vmatprep.subr.bf16.mxu0 0
        %663 = vmatpush1.bf16.msra.mxu0 0
        %664 = vmatprep.subr.bf16.mxu0 0
        %665 = vmatpush1.bf16.msra.mxu0 0
        %666 = vmatprep.subr.bf16.mxu0 0
        %667 = vmatpush1.bf16.msra.mxu0 0
        %668 = vmatprep.subr.bf16.mxu0 0
        %669 = vmatpush1.bf16.msra.mxu0 0
        %670 = vmatprep.subr.bf16.mxu0 0
        %671 = vmatpush1.bf16.msra.mxu0 0
        %672 = vmatprep.subr.bf16.mxu0 0
        %673 = vmatpush1.bf16.msra.mxu0 0
        %674 = vmatprep.subr.bf16.mxu0 0
        %675 = vmatpush1.bf16.msra.mxu0 0
        %676 = vmatprep.subr.bf16.mxu0 0
        %677 = vmatpush1.bf16.msra.mxu0 0
        %678 = vmatprep.subr.bf16.mxu0 0
        %679 = vmatpush1.bf16.msra.mxu0 0
        %680 = vmatprep.subr.bf16.mxu0 0
        %681 = vmatpush1.bf16.msra.mxu0 0
        %682 = vmatprep.mubr.bf16.mxu0 0
        %683 = vmatmul.mubr.bf16.gmra.mrb[0].mxu0 %v624
        %v684 = vpop.f32.mrb[0].mxu0
        %v685 = vadd.f32 %v494, %v684
        %v686 = vpop.f32.mrb[0].mxu0
        %v687 = vadd.f32 %v496, %v686
        %v688 = vpop.f32.mrb[0].mxu0
        %v689 = vpop.f32.mrb[0].mxu0
        %690 = vdwg.mxu0
        %691 = vmatprep.subr.bf16.mxu0 %v636
        %692 = vmatpush1.bf16.msra.mxu0 %v633
        %693 = vmatprep.subr.bf16.mxu0 0
        %694 = vmatpush1.bf16.msra.mxu0 0
        %695 = vmatprep.subr.bf16.mxu0 0
        %696 = vmatpush1.bf16.msra.mxu0 0
        %697 = vmatprep.subr.bf16.mxu0 0
        %698 = vmatpush1.bf16.msra.mxu0 0
        %699 = vmatprep.subr.bf16.mxu0 0
        %700 = vmatpush1.bf16.msra.mxu0 0
        %701 = vmatprep.subr.bf16.mxu0 0
        %702 = vmatpush1.bf16.msra.mxu0 0
        %703 = vmatprep.subr.bf16.mxu0 0
        %704 = vmatpush1.bf16.msra.mxu0 0
        %705 = vmatprep.subr.bf16.mxu0 0
        %706 = vmatpush1.bf16.msra.mxu0 0
        %707 = vmatprep.subr.bf16.mxu0 0
        %708 = vmatpush1.bf16.msra.mxu0 0
        %709 = vmatprep.subr.bf16.mxu0 0
        %710 = vmatpush1.bf16.msra.mxu0 0
        %711 = vmatprep.subr.bf16.mxu0 0
        %712 = vmatpush1.bf16.msra.mxu0 0
        %713 = vmatprep.subr.bf16.mxu0 0
        %714 = vmatpush1.bf16.msra.mxu0 0
        %715 = vmatprep.subr.bf16.mxu0 0
        %716 = vmatpush1.bf16.msra.mxu0 0
        %717 = vmatprep.subr.bf16.mxu0 0
        %718 = vmatpush1.bf16.msra.mxu0 0
        %719 = vmatprep.subr.bf16.mxu0 0
        %720 = vmatpush1.bf16.msra.mxu0 0
        %721 = vmatprep.subr.bf16.mxu0 0
        %722 = vmatpush1.bf16.msra.mxu0 0
        %723 = vmatprep.mubr.bf16.mxu0 0
        %724 = vmatmul.mubr.bf16.gmra.mrb[0].mxu0 %v624
        %v725 = vpop.f32.mrb[0].mxu0
        %v726 = vadd.f32 %v535, %v725
        %v727 = vpop.f32.mrb[0].mxu0
        %v728 = vadd.f32 %v537, %v727
        %v729 = vpop.f32.mrb[0].mxu0
        %v730 = vpop.f32.mrb[0].mxu0
        %731 = vdwg.mxu0
        %732 = vmatprep.subr.bf16.mxu0 %v642
        %733 = vmatpush1.bf16.msra.mxu0 %v639
        %734 = vmatprep.subr.bf16.mxu0 0
        %735 = vmatpush1.bf16.msra.mxu0 0
        %736 = vmatprep.subr.bf16.mxu0 0
        %737 = vmatpush1.bf16.msra.mxu0 0
        %738 = vmatprep.subr.bf16.mxu0 0
        %739 = vmatpush1.bf16.msra.mxu0 0
        %740 = vmatprep.subr.bf16.mxu0 0
        %741 = vmatpush1.bf16.msra.mxu0 0
        %742 = vmatprep.subr.bf16.mxu0 0
        %743 = vmatpush1.bf16.msra.mxu0 0
        %744 = vmatprep.subr.bf16.mxu0 0
        %745 = vmatpush1.bf16.msra.mxu0 0
        %746 = vmatprep.subr.bf16.mxu0 0
        %747 = vmatpush1.bf16.msra.mxu0 0
        %748 = vmatprep.subr.bf16.mxu0 0
        %749 = vmatpush1.bf16.msra.mxu0 0
        %750 = vmatprep.subr.bf16.mxu0 0
        %751 = vmatpush1.bf16.msra.mxu0 0
        %752 = vmatprep.subr.bf16.mxu0 0
        %753 = vmatpush1.bf16.msra.mxu0 0
        %754 = vmatprep.subr.bf16.mxu0 0
        %755 = vmatpush1.bf16.msra.mxu0 0
        %756 = vmatprep.subr.bf16.mxu0 0
        %757 = vmatpush1.bf16.msra.mxu0 0
        %758 = vmatprep.subr.bf16.mxu0 0
        %759 = vmatpush1.bf16.msra.mxu0 0
        %760 = vmatprep.subr.bf16.mxu0 0
        %761 = vmatpush1.bf16.msra.mxu0 0
        %762 = vmatprep.subr.bf16.mxu0 0
        %763 = vmatpush1.bf16.msra.mxu0 0
        %764 = vmatprep.mubr.bf16.mxu0 0
        %765 = vmatmul.mubr.bf16.gmra.mrb[0].mxu0 %v624
        %v766 = vpop.f32.mrb[0].mxu0
        %v767 = vadd.f32 %v576, %v766
        %v768 = vpop.f32.mrb[0].mxu0
        %v769 = vadd.f32 %v578, %v768
        %v770 = vpop.f32.mrb[0].mxu0
        %v771 = vpop.f32.mrb[0].mxu0
        %772 = vdwg.mxu0
        %773 = vmatprep.subr.bf16.mxu0 %v648
        %774 = vmatpush1.bf16.msra.mxu0 %v645
        %775 = vmatprep.subr.bf16.mxu0 0
        %776 = vmatpush1.bf16.msra.mxu0 0
        %777 = vmatprep.subr.bf16.mxu0 0
        %778 = vmatpush1.bf16.msra.mxu0 0
        %779 = vmatprep.subr.bf16.mxu0 0
        %780 = vmatpush1.bf16.msra.mxu0 0
        %781 = vmatprep.subr.bf16.mxu0 0
        %782 = vmatpush1.bf16.msra.mxu0 0
        %783 = vmatprep.subr.bf16.mxu0 0
        %784 = vmatpush1.bf16.msra.mxu0 0
        %785 = vmatprep.subr.bf16.mxu0 0
        %786 = vmatpush1.bf16.msra.mxu0 0
        %787 = vmatprep.subr.bf16.mxu0 0
        %788 = vmatpush1.bf16.msra.mxu0 0
        %789 = vmatprep.subr.bf16.mxu0 0
        %790 = vmatpush1.bf16.msra.mxu0 0
        %791 = vmatprep.subr.bf16.mxu0 0
        %792 = vmatpush1.bf16.msra.mxu0 0
        %793 = vmatprep.subr.bf16.mxu0 0
        %794 = vmatpush1.bf16.msra.mxu0 0
        %795 = vmatprep.subr.bf16.mxu0 0
        %796 = vmatpush1.bf16.msra.mxu0 0
        %797 = vmatprep.subr.bf16.mxu0 0
        %798 = vmatpush1.bf16.msra.mxu0 0
        %799 = vmatprep.subr.bf16.mxu0 0
        %800 = vmatpush1.bf16.msra.mxu0 0
        %801 = vmatprep.subr.bf16.mxu0 0
        %802 = vmatpush1.bf16.msra.mxu0 0
        %803 = vmatprep.subr.bf16.mxu0 0
        %804 = vmatpush1.bf16.msra.mxu0 0
        %805 = vmatprep.mubr.bf16.mxu0 0
        %806 = vmatmul.mubr.bf16.gmra.mrb[0].mxu0 %v624
        %v807 = vpop.f32.mrb[0].mxu0
        %v808 = vadd.f32 %v617, %v807
        %v809 = vpop.f32.mrb[0].mxu0
        %v810 = vadd.f32 %v619, %v809
        %v811 = vpop.f32.mrb[0].mxu0
        %v812 = vpop.f32.mrb[0].mxu0
        %813 = vdwg.mxu0
        %s814 = scalar_lea.vmem %s1, 8
        %v815 = vld [vmem:[%s814] sm:$0xf]
        %v816 = vld [vmem:[#allocation2] sm:$0xff]
        %v817 = vld [vmem:[#allocation2 + $0x8] sm:$0xff]
        %v818 = vld [vmem:[#allocation2 + $0x10] sm:$0x3]
        %v822 = vcombine.high %v816, %v816
        %v824 = vunpack.c.l.s4 1983009808
        %v825 = vunpack.c.0.s8 %v824
        %v826 = vlaneseq
        %v827 = vshrl.u32 %v826, 7
        %v828 = vsub.s32 %v825, %v827
        %v829 = vrot.slane %v816, %v828
        %v831 = vunpack.c.l.s4 1983009808
        %v832 = vunpack.c.0.s8 %v831
        %v833 = vlaneseq
        %v834 = vshrl.u32 %v833, 7
        %v835 = vsub.s32 %v832, %v834
        %v836 = vrot.slane %v822, %v835
        %v837 = vcombine.high %v829, %v829
        %v838 = vcombine.high %v836, %v836
        %v839 = vcombine.high %v817, %v817
        %v841 = vunpack.c.l.s4 1983009808
        %v842 = vunpack.c.0.s8 %v841
        %v843 = vlaneseq
        %v844 = vshrl.u32 %v843, 7
        %v845 = vsub.s32 %v842, %v844
        %v846 = vrot.slane %v817, %v845
        %v848 = vunpack.c.l.s4 1983009808
        %v849 = vunpack.c.0.s8 %v848
        %v850 = vlaneseq
        %v851 = vshrl.u32 %v850, 7
        %v852 = vsub.s32 %v849, %v851
        %v853 = vrot.slane %v839, %v852
        %v854 = vcombine.high %v846, %v846
        %v855 = vcombine.high %v853, %v853
        %v857 = vunpack.c.l.s4 1983009808
        %v858 = vunpack.c.0.s8 %v857
        %v859 = vlaneseq
        %v860 = vshrl.u32 %v859, 7
        %v861 = vsub.s32 %v858, %v860
        %v862 = vrot.slane %v818, %v861
        %863 = vrot.lane.b32.xlu0 %v829, 124
        %v864 = vpop.permute.xlu0 %863
        %865 = vrot.lane.b32.xlu0 %v837, 124
        %v866 = vpop.permute.xlu0 %865
        %867 = vrot.lane.b32.xlu0 %v836, 124
        %v868 = vpop.permute.xlu0 %867
        %869 = vrot.lane.b32.xlu0 %v838, 124
        %v870 = vpop.permute.xlu0 %869
        %871 = vrot.lane.b32.xlu0 %v846, 124
        %v872 = vpop.permute.xlu0 %871
        %873 = vrot.lane.b32.xlu0 %v854, 124
        %v874 = vpop.permute.xlu0 %873
        %875 = vrot.lane.b32.xlu0 %v853, 124
        %v876 = vpop.permute.xlu0 %875
        %877 = vrot.lane.b32.xlu0 %v855, 124
        %v878 = vpop.permute.xlu0 %877
        %879 = vrot.lane.b32.xlu0 %v862, 124
        %v880 = vpop.permute.xlu0 %879
        %vm881 = vcmask 1014784
        %v882 = vsel %vm881, %v864, %v866
        %v883 = vsel %vm881, %v866, %v868
        %v884 = vsel %vm881, %v868, %v870
        %v885 = vsel %vm881, %v870, %v872
        %v886 = vsel %vm881, %v872, %v874
        %v887 = vsel %vm881, %v874, %v876
        %v888 = vsel %vm881, %v876, %v878
        %v889 = vsel %vm881, %v878, %v880
        %v891 = vsel %vm430, %v815, 0
        %v894 = vsel %vm434, %v882, 0
        %v897 = vsel %vm434, %v883, 0
        %v900 = vsel %vm434, %v884, 0
        %v903 = vsel %vm434, %v885, 0
        %v906 = vsel %vm434, %v886, 0
        %v909 = vsel %vm434, %v887, 0
        %v912 = vsel %vm434, %v888, 0
        %v915 = vsel %vm434, %v889, 0
        %917 = vmatprep.subr.bf16.mxu0 %v897
        %918 = vmatpush1.bf16.msra.mxu0 %v894
        %919 = vmatprep.subr.bf16.mxu0 0
        %920 = vmatpush1.bf16.msra.mxu0 0
        %921 = vmatprep.subr.bf16.mxu0 0
        %922 = vmatpush1.bf16.msra.mxu0 0
        %923 = vmatprep.subr.bf16.mxu0 0
        %924 = vmatpush1.bf16.msra.mxu0 0
        %925 = vmatprep.subr.bf16.mxu0 0
        %926 = vmatpush1.bf16.msra.mxu0 0
        %927 = vmatprep.subr.bf16.mxu0 0
        %928 = vmatpush1.bf16.msra.mxu0 0
        %929 = vmatprep.subr.bf16.mxu0 0
        %930 = vmatpush1.bf16.msra.mxu0 0
        %931 = vmatprep.subr.bf16.mxu0 0
        %932 = vmatpush1.bf16.msra.mxu0 0
        %933 = vmatprep.subr.bf16.mxu0 0
        %934 = vmatpush1.bf16.msra.mxu0 0
        %935 = vmatprep.subr.bf16.mxu0 0
        %936 = vmatpush1.bf16.msra.mxu0 0
        %937 = vmatprep.subr.bf16.mxu0 0
        %938 = vmatpush1.bf16.msra.mxu0 0
        %939 = vmatprep.subr.bf16.mxu0 0
        %940 = vmatpush1.bf16.msra.mxu0 0
        %941 = vmatprep.subr.bf16.mxu0 0
        %942 = vmatpush1.bf16.msra.mxu0 0
        %943 = vmatprep.subr.bf16.mxu0 0
        %944 = vmatpush1.bf16.msra.mxu0 0
        %945 = vmatprep.subr.bf16.mxu0 0
        %946 = vmatpush1.bf16.msra.mxu0 0
        %947 = vmatprep.subr.bf16.mxu0 0
        %948 = vmatpush1.bf16.msra.mxu0 0
        %949 = vmatprep.mubr.bf16.mxu0 0
        %950 = vmatmul.mubr.bf16.gmra.mrb[0].mxu0 %v891
        %v951 = vpop.f32.mrb[0].mxu0
        %v952 = vadd.f32 0.0, %v951
        %v953 = vpop.f32.mrb[0].mxu0
        %v954 = vadd.f32 0.0, %v953
        %v955 = vpop.f32.mrb[0].mxu0
        %v956 = vpop.f32.mrb[0].mxu0
        %957 = vdwg.mxu0
        %958 = vmatprep.subr.bf16.mxu0 %v903
        %959 = vmatpush1.bf16.msra.mxu0 %v900
        %960 = vmatprep.subr.bf16.mxu0 0
        %961 = vmatpush1.bf16.msra.mxu0 0
        %962 = vmatprep.subr.bf16.mxu0 0
        %963 = vmatpush1.bf16.msra.mxu0 0
        %964 = vmatprep.subr.bf16.mxu0 0
        %965 = vmatpush1.bf16.msra.mxu0 0
        %966 = vmatprep.subr.bf16.mxu0 0
        %967 = vmatpush1.bf16.msra.mxu0 0
        %968 = vmatprep.subr.bf16.mxu0 0
        %969 = vmatpush1.bf16.msra.mxu0 0
        %970 = vmatprep.subr.bf16.mxu0 0
        %971 = vmatpush1.bf16.msra.mxu0 0
        %972 = vmatprep.subr.bf16.mxu0 0
        %973 = vmatpush1.bf16.msra.mxu0 0
        %974 = vmatprep.subr.bf16.mxu0 0
        %975 = vmatpush1.bf16.msra.mxu0 0
        %976 = vmatprep.subr.bf16.mxu0 0
        %977 = vmatpush1.bf16.msra.mxu0 0
        %978 = vmatprep.subr.bf16.mxu0 0
        %979 = vmatpush1.bf16.msra.mxu0 0
        %980 = vmatprep.subr.bf16.mxu0 0
        %981 = vmatpush1.bf16.msra.mxu0 0
        %982 = vmatprep.subr.bf16.mxu0 0
        %983 = vmatpush1.bf16.msra.mxu0 0
        %984 = vmatprep.subr.bf16.mxu0 0
        %985 = vmatpush1.bf16.msra.mxu0 0
        %986 = vmatprep.subr.bf16.mxu0 0
        %987 = vmatpush1.bf16.msra.mxu0 0
        %988 = vmatprep.subr.bf16.mxu0 0
        %989 = vmatpush1.bf16.msra.mxu0 0
        %990 = vmatprep.mubr.bf16.mxu0 0
        %991 = vmatmul.mubr.bf16.gmra.mrb[0].mxu0 %v891
        %v992 = vpop.f32.mrb[0].mxu0
        %v993 = vadd.f32 0.0, %v992
        %v994 = vpop.f32.mrb[0].mxu0
        %v995 = vadd.f32 0.0, %v994
        %v996 = vpop.f32.mrb[0].mxu0
        %v997 = vpop.f32.mrb[0].mxu0
        %998 = vdwg.mxu0
        %999 = vmatprep.subr.bf16.mxu0 %v909
        %1000 = vmatpush1.bf16.msra.mxu0 %v906
        %1001 = vmatprep.subr.bf16.mxu0 0
        %1002 = vmatpush1.bf16.msra.mxu0 0
        %1003 = vmatprep.subr.bf16.mxu0 0
        %1004 = vmatpush1.bf16.msra.mxu0 0
        %1005 = vmatprep.subr.bf16.mxu0 0
        %1006 = vmatpush1.bf16.msra.mxu0 0
        %1007 = vmatprep.subr.bf16.mxu0 0
        %1008 = vmatpush1.bf16.msra.mxu0 0
        %1009 = vmatprep.subr.bf16.mxu0 0
        %1010 = vmatpush1.bf16.msra.mxu0 0
        %1011 = vmatprep.subr.bf16.mxu0 0
        %1012 = vmatpush1.bf16.msra.mxu0 0
        %1013 = vmatprep.subr.bf16.mxu0 0
        %1014 = vmatpush1.bf16.msra.mxu0 0
        %1015 = vmatprep.subr.bf16.mxu0 0
        %1016 = vmatpush1.bf16.msra.mxu0 0
        %1017 = vmatprep.subr.bf16.mxu0 0
        %1018 = vmatpush1.bf16.msra.mxu0 0
        %1019 = vmatprep.subr.bf16.mxu0 0
        %1020 = vmatpush1.bf16.msra.mxu0 0
        %1021 = vmatprep.subr.bf16.mxu0 0
        %1022 = vmatpush1.bf16.msra.mxu0 0
        %1023 = vmatprep.subr.bf16.mxu0 0
        %1024 = vmatpush1.bf16.msra.mxu0 0
        %1025 = vmatprep.subr.bf16.mxu0 0
        %1026 = vmatpush1.bf16.msra.mxu0 0
        %1027 = vmatprep.subr.bf16.mxu0 0
        %1028 = vmatpush1.bf16.msra.mxu0 0
        %1029 = vmatprep.subr.bf16.mxu0 0
        %1030 = vmatpush1.bf16.msra.mxu0 0
        %1031 = vmatprep.mubr.bf16.mxu0 0
        %1032 = vmatmul.mubr.bf16.gmra.mrb[0].mxu0 %v891
        %v1033 = vpop.f32.mrb[0].mxu0
        %v1034 = vadd.f32 0.0, %v1033
        %v1035 = vpop.f32.mrb[0].mxu0
        %v1036 = vadd.f32 0.0, %v1035
        %v1037 = vpop.f32.mrb[0].mxu0
        %v1038 = vpop.f32.mrb[0].mxu0
        %1039 = vdwg.mxu0
        %1040 = vmatprep.subr.bf16.mxu0 %v915
        %1041 = vmatpush1.bf16.msra.mxu0 %v912
        %1042 = vmatprep.subr.bf16.mxu0 0
        %1043 = vmatpush1.bf16.msra.mxu0 0
        %1044 = vmatprep.subr.bf16.mxu0 0
        %1045 = vmatpush1.bf16.msra.mxu0 0
        %1046 = vmatprep.subr.bf16.mxu0 0
        %1047 = vmatpush1.bf16.msra.mxu0 0
        %1048 = vmatprep.subr.bf16.mxu0 0
        %1049 = vmatpush1.bf16.msra.mxu0 0
        %1050 = vmatprep.subr.bf16.mxu0 0
        %1051 = vmatpush1.bf16.msra.mxu0 0
        %1052 = vmatprep.subr.bf16.mxu0 0
        %1053 = vmatpush1.bf16.msra.mxu0 0
        %1054 = vmatprep.subr.bf16.mxu0 0
        %1055 = vmatpush1.bf16.msra.mxu0 0
        %1056 = vmatprep.subr.bf16.mxu0 0
        %1057 = vmatpush1.bf16.msra.mxu0 0
        %1058 = vmatprep.subr.bf16.mxu0 0
        %1059 = vmatpush1.bf16.msra.mxu0 0
        %1060 = vmatprep.subr.bf16.mxu0 0
        %1061 = vmatpush1.bf16.msra.mxu0 0
        %1062 = vmatprep.subr.bf16.mxu0 0
        %1063 = vmatpush1.bf16.msra.mxu0 0
        %1064 = vmatprep.subr.bf16.mxu0 0
        %1065 = vmatpush1.bf16.msra.mxu0 0
        %1066 = vmatprep.subr.bf16.mxu0 0
        %1067 = vmatpush1.bf16.msra.mxu0 0
        %1068 = vmatprep.subr.bf16.mxu0 0
        %1069 = vmatpush1.bf16.msra.mxu0 0
        %1070 = vmatprep.subr.bf16.mxu0 0
        %1071 = vmatpush1.bf16.msra.mxu0 0
        %1072 = vmatprep.mubr.bf16.mxu0 0
        %1073 = vmatmul.mubr.bf16.gmra.mrb[0].mxu0 %v891
        %v1074 = vpop.f32.mrb[0].mxu0
        %v1075 = vadd.f32 0.0, %v1074
        %v1076 = vpop.f32.mrb[0].mxu0
        %v1077 = vadd.f32 0.0, %v1076
        %v1078 = vpop.f32.mrb[0].mxu0
        %v1079 = vpop.f32.mrb[0].mxu0
        %1080 = vdwg.mxu0
        %v1081 = vadd.f32 %v685, %v952
        %v1082 = vadd.f32 %v687, %v954
        %v1083 = vadd.f32 %v726, %v993
        %v1084 = vadd.f32 %v728, %v995
        %v1085 = vadd.f32 %v767, %v1034
        %v1086 = vadd.f32 %v769, %v1036
        %v1087 = vadd.f32 %v808, %v1075
        %v1088 = vadd.f32 %v810, %v1077
        %v1089 = vld [vmem:[%s2] sm:$0xff]
        %1091 = vset.pattern.permute.xlu0 0
        %1092 = vperm.xlu0 %1091, %v1089
        %v1093 = vpop.permute.xlu0 %1092
        %v1095 = vadd.f32 %v1081, %v1093
        %v1096 = vadd.f32 %v1082, %v1093
        %v1097 = vadd.f32 %v1083, %v1093
        %v1098 = vadd.f32 %v1084, %v1093
        %v1099 = vadd.f32 %v1085, %v1093
        %v1100 = vadd.f32 %v1086, %v1093
        %v1101 = vadd.f32 %v1087, %v1093
        %v1102 = vadd.f32 %v1088, %v1093
        %v1103 = vmax.f32 %v1095, 0.0
        %v1104 = vmax.f32 %v1096, 0.0
        %v1105 = vmax.f32 %v1097, 0.0
        %v1106 = vmax.f32 %v1098, 0.0
        %v1107 = vmax.f32 %v1099, 0.0
        %v1108 = vmax.f32 %v1100, 0.0
        %v1109 = vmax.f32 %v1101, 0.0
        %v1110 = vmax.f32 %v1102, 0.0
        %v1111 = vpack.c.bf16 %v1103, %v1103
        %v1112 = vpack.c.bf16 %v1104, %v1104
        %v1113 = vpack.c.bf16 %v1105, %v1105
        %v1114 = vpack.c.bf16 %v1106, %v1106
        %v1115 = vpack.c.bf16 %v1107, %v1107
        %v1116 = vpack.c.bf16 %v1108, %v1108
        %v1117 = vpack.c.bf16 %v1109, %v1109
        %v1118 = vpack.c.bf16 %v1110, %v1110
        %v1127 = vunpack.c.l.b16 %v1111
        %v1128 = vunpack.c.l.b16 %v1112
        %v1129 = vunpack.c.l.b16 %v1113
        %v1130 = vunpack.c.l.b16 %v1114
        %v1131 = vunpack.c.l.b16 %v1115
        %v1132 = vunpack.c.l.b16 %v1116
        %v1133 = vunpack.c.l.b16 %v1117
        %v1134 = vunpack.c.l.b16 %v1118
        %v1135 = vpack.c.b16 %v1128, %v1127
        %v1136 = vpack.c.b16 %v1130, %v1129
        %v1137 = vpack.c.b16 %v1132, %v1131
        %v1138 = vpack.c.b16 %v1134, %v1133
        %1139 = vrot.lane.b32.xlu0 %v1135, 4
        %v1140 = vpop.permute.xlu0 %1139
        %1141 = vrot.lane.b32.xlu0 %v1136, 4
        %v1142 = vpop.permute.xlu0 %1141
        %1143 = vrot.lane.b32.xlu0 %v1137, 4
        %v1144 = vpop.permute.xlu0 %1143
        %1145 = vrot.lane.b32.xlu0 %v1138, 4
        %v1146 = vpop.permute.xlu0 %1145
        %v1147 = vrot.slane %v1140, 4
        %v1148 = vrot.slane %v1142, 4
        %v1149 = vrot.slane %v1144, 4
        %v1150 = vrot.slane %v1146, 4
        %v1151 = vsel %vm334, %v1147, %v1140
        %vm1152 = vcmask 1043456
        %v1153 = vsel %vm1152, %v1147, %v1148
        %v1154 = vsel %vm334, %v1153, %v1142
        %v1155 = vsel %vm1152, %v1148, %v1149
        %v1156 = vsel %vm334, %v1155, %v1144
        %v1157 = vsel %vm1152, %v1149, %v1150
        %v1158 = vsel %vm334, %v1157, %v1146
        %vm1164 = vcmask 1043488
        %vm1165 = vcmask 1047556
        %vm1166 = vmor %vm1165, %vm1164
        %1167 = vst.msk [vmem:[#allocation3] sm:$0xff] %vm1166, %v1151
        %1168 = vst [vmem:[#allocation3 + $0x8] sm:$0xff] %v1154
        %1169 = vst [vmem:[#allocation3 + $0x10] sm:$0xff] %v1156
        %1170 = vst [vmem:[#allocation3 + $0x18] sm:$0xff] %v1158
        %vm1171 = vcmask 27648
        %1172 = vst.msk [vmem:[#allocation3 + $0x20] sm:$0xf] %vm1171, %v1150
        %v1173 = vld [vmem:[%s3] sm:$0xf]
        %v1174 = vld [vmem:[#allocation3] sm:$0xff]
        %v1175 = vld [vmem:[#allocation3 + $0x8] sm:$0xff]
        %v1176 = vld [vmem:[#allocation3 + $0x10] sm:$0xff]
        %v1177 = vld [vmem:[#allocation3 + $0x18] sm:$0xff]
        %s1178 = scalar_lea.vmem %s3, 4
        %v1179 = vld [vmem:[%s1178] sm:$0xf]
        %v1180 = vld [vmem:[#allocation3 + $0x20] sm:$0xf]
        %v1186 = vunpack.c.l.b16 %v1174
        %v1187 = vunpack.c.h.b16 %v1174
        %v1188 = vunpack.c.l.b16 %v1175
        %v1189 = vunpack.c.h.b16 %v1175
        %v1190 = vunpack.c.l.b16 %v1176
        %v1191 = vunpack.c.h.b16 %v1176
        %v1192 = vunpack.c.l.b16 %v1177
        %v1193 = vunpack.c.h.b16 %v1177
        %v1194 = vunpack.c.l.b16 %v1180
        %v1195 = vpack.c.b16 %v1186, %v1186
        %v1196 = vpack.c.b16 %v1187, %v1187
        %v1197 = vpack.c.b16 %v1188, %v1188
        %v1198 = vpack.c.b16 %v1189, %v1189
        %v1199 = vpack.c.b16 %v1190, %v1190
        %v1200 = vpack.c.b16 %v1191, %v1191
        %v1201 = vpack.c.b16 %v1192, %v1192
        %v1202 = vpack.c.b16 %v1193, %v1193
        %v1203 = vpack.c.b16 %v1194, %v1194
        %1204 = vrot.lane.b32.xlu0 %v1195, 126
        %v1205 = vpop.permute.xlu0 %1204
        %1206 = vrot.lane.b32.xlu0 %v1196, 126
        %v1207 = vpop.permute.xlu0 %1206
        %1208 = vrot.lane.b32.xlu0 %v1197, 126
        %v1209 = vpop.permute.xlu0 %1208
        %1210 = vrot.lane.b32.xlu0 %v1198, 126
        %v1211 = vpop.permute.xlu0 %1210
        %1212 = vrot.lane.b32.xlu0 %v1199, 126
        %v1213 = vpop.permute.xlu0 %1212
        %1214 = vrot.lane.b32.xlu0 %v1200, 126
        %v1215 = vpop.permute.xlu0 %1214
        %1216 = vrot.lane.b32.xlu0 %v1201, 126
        %v1217 = vpop.permute.xlu0 %1216
        %1218 = vrot.lane.b32.xlu0 %v1202, 126
        %v1219 = vpop.permute.xlu0 %1218
        %1220 = vrot.lane.b32.xlu0 %v1203, 126
        %v1221 = vpop.permute.xlu0 %1220
        %v1222 = vsel %vm421, %v1205, %v1207
        %v1223 = vsel %vm421, %v1207, %v1209
        %v1224 = vsel %vm421, %v1209, %v1211
        %v1225 = vsel %vm421, %v1211, %v1213
        %v1226 = vsel %vm421, %v1213, %v1215
        %v1227 = vsel %vm421, %v1215, %v1217
        %v1228 = vsel %vm421, %v1217, %v1219
        %v1229 = vsel %vm421, %v1219, %v1221
        %vm1230 = vcmask 64512
        %v1232 = vsel %vm1230, %v1179, 0
        %vm1234 = vcmask 1043456
        %v1236 = vsel %vm1234, %v1222, 0
        %v1239 = vsel %vm1234, %v1223, 0
        %v1242 = vsel %vm1234, %v1224, 0
        %v1245 = vsel %vm1234, %v1225, 0
        %v1248 = vsel %vm1234, %v1226, 0
        %v1251 = vsel %vm1234, %v1227, 0
        %v1254 = vsel %vm1234, %v1228, 0
        %v1257 = vsel %vm1234, %v1229, 0
        %1259 = vmatprep.subr.bf16.mxu0 %v1239
        %1260 = vmatpush1.bf16.msra.mxu0 %v1236
        %1261 = vmatprep.subr.bf16.mxu0 0
        %1262 = vmatpush1.bf16.msra.mxu0 0
        %1263 = vmatprep.subr.bf16.mxu0 0
        %1264 = vmatpush1.bf16.msra.mxu0 0
        %1265 = vmatprep.subr.bf16.mxu0 0
        %1266 = vmatpush1.bf16.msra.mxu0 0
        %1267 = vmatprep.subr.bf16.mxu0 0
        %1268 = vmatpush1.bf16.msra.mxu0 0
        %1269 = vmatprep.subr.bf16.mxu0 0
        %1270 = vmatpush1.bf16.msra.mxu0 0
        %1271 = vmatprep.subr.bf16.mxu0 0
        %1272 = vmatpush1.bf16.msra.mxu0 0
        %1273 = vmatprep.subr.bf16.mxu0 0
        %1274 = vmatpush1.bf16.msra.mxu0 0
        %1275 = vmatprep.subr.bf16.mxu0 0
        %1276 = vmatpush1.bf16.msra.mxu0 0
        %1277 = vmatprep.subr.bf16.mxu0 0
        %1278 = vmatpush1.bf16.msra.mxu0 0
        %1279 = vmatprep.subr.bf16.mxu0 0
        %1280 = vmatpush1.bf16.msra.mxu0 0
        %1281 = vmatprep.subr.bf16.mxu0 0
        %1282 = vmatpush1.bf16.msra.mxu0 0
        %1283 = vmatprep.subr.bf16.mxu0 0
        %1284 = vmatpush1.bf16.msra.mxu0 0
        %1285 = vmatprep.subr.bf16.mxu0 0
        %1286 = vmatpush1.bf16.msra.mxu0 0
        %1287 = vmatprep.subr.bf16.mxu0 0
        %1288 = vmatpush1.bf16.msra.mxu0 0
        %1289 = vmatprep.subr.bf16.mxu0 0
        %1290 = vmatpush1.bf16.msra.mxu0 0
        %1291 = vmatprep.mubr.bf16.mxu0 0
        %1292 = vmatmul.mubr.bf16.gmra.mrb[0].mxu0 %v1232
        %v1293 = vpop.f32.mrb[0].mxu0
        %v1294 = vadd.f32 0.0, %v1293
        %v1295 = vpop.f32.mrb[0].mxu0
        %v1296 = vadd.f32 0.0, %v1295
        %v1297 = vpop.f32.mrb[0].mxu0
        %v1298 = vpop.f32.mrb[0].mxu0
        %1299 = vdwg.mxu0
        %1300 = vmatprep.subr.bf16.mxu0 %v1245
        %1301 = vmatpush1.bf16.msra.mxu0 %v1242
        %1302 = vmatprep.subr.bf16.mxu0 0
        %1303 = vmatpush1.bf16.msra.mxu0 0
        %1304 = vmatprep.subr.bf16.mxu0 0
        %1305 = vmatpush1.bf16.msra.mxu0 0
        %1306 = vmatprep.subr.bf16.mxu0 0
        %1307 = vmatpush1.bf16.msra.mxu0 0
        %1308 = vmatprep.subr.bf16.mxu0 0
        %1309 = vmatpush1.bf16.msra.mxu0 0
        %1310 = vmatprep.subr.bf16.mxu0 0
        %1311 = vmatpush1.bf16.msra.mxu0 0
        %1312 = vmatprep.subr.bf16.mxu0 0
        %1313 = vmatpush1.bf16.msra.mxu0 0
        %1314 = vmatprep.subr.bf16.mxu0 0
        %1315 = vmatpush1.bf16.msra.mxu0 0
        %1316 = vmatprep.subr.bf16.mxu0 0
        %1317 = vmatpush1.bf16.msra.mxu0 0
        %1318 = vmatprep.subr.bf16.mxu0 0
        %1319 = vmatpush1.bf16.msra.mxu0 0
        %1320 = vmatprep.subr.bf16.mxu0 0
        %1321 = vmatpush1.bf16.msra.mxu0 0
        %1322 = vmatprep.subr.bf16.mxu0 0
        %1323 = vmatpush1.bf16.msra.mxu0 0
        %1324 = vmatprep.subr.bf16.mxu0 0
        %1325 = vmatpush1.bf16.msra.mxu0 0
        %1326 = vmatprep.subr.bf16.mxu0 0
        %1327 = vmatpush1.bf16.msra.mxu0 0
        %1328 = vmatprep.subr.bf16.mxu0 0
        %1329 = vmatpush1.bf16.msra.mxu0 0
        %1330 = vmatprep.subr.bf16.mxu0 0
        %1331 = vmatpush1.bf16.msra.mxu0 0
        %1332 = vmatprep.mubr.bf16.mxu0 0
        %1333 = vmatmul.mubr.bf16.gmra.mrb[0].mxu0 %v1232
        %v1334 = vpop.f32.mrb[0].mxu0
        %v1335 = vadd.f32 0.0, %v1334
        %v1336 = vpop.f32.mrb[0].mxu0
        %v1337 = vadd.f32 0.0, %v1336
        %v1338 = vpop.f32.mrb[0].mxu0
        %v1339 = vpop.f32.mrb[0].mxu0
        %1340 = vdwg.mxu0
        %1341 = vmatprep.subr.bf16.mxu0 %v1251
        %1342 = vmatpush1.bf16.msra.mxu0 %v1248
        %1343 = vmatprep.subr.bf16.mxu0 0
        %1344 = vmatpush1.bf16.msra.mxu0 0
        %1345 = vmatprep.subr.bf16.mxu0 0
        %1346 = vmatpush1.bf16.msra.mxu0 0
        %1347 = vmatprep.subr.bf16.mxu0 0
        %1348 = vmatpush1.bf16.msra.mxu0 0
        %1349 = vmatprep.subr.bf16.mxu0 0
        %1350 = vmatpush1.bf16.msra.mxu0 0
        %1351 = vmatprep.subr.bf16.mxu0 0
        %1352 = vmatpush1.bf16.msra.mxu0 0
        %1353 = vmatprep.subr.bf16.mxu0 0
        %1354 = vmatpush1.bf16.msra.mxu0 0
        %1355 = vmatprep.subr.bf16.mxu0 0
        %1356 = vmatpush1.bf16.msra.mxu0 0
        %1357 = vmatprep.subr.bf16.mxu0 0
        %1358 = vmatpush1.bf16.msra.mxu0 0
        %1359 = vmatprep.subr.bf16.mxu0 0
        %1360 = vmatpush1.bf16.msra.mxu0 0
        %1361 = vmatprep.subr.bf16.mxu0 0
        %1362 = vmatpush1.bf16.msra.mxu0 0
        %1363 = vmatprep.subr.bf16.mxu0 0
        %1364 = vmatpush1.bf16.msra.mxu0 0
        %1365 = vmatprep.subr.bf16.mxu0 0
        %1366 = vmatpush1.bf16.msra.mxu0 0
        %1367 = vmatprep.subr.bf16.mxu0 0
        %1368 = vmatpush1.bf16.msra.mxu0 0
        %1369 = vmatprep.subr.bf16.mxu0 0
        %1370 = vmatpush1.bf16.msra.mxu0 0
        %1371 = vmatprep.subr.bf16.mxu0 0
        %1372 = vmatpush1.bf16.msra.mxu0 0
        %1373 = vmatprep.mubr.bf16.mxu0 0
        %1374 = vmatmul.mubr.bf16.gmra.mrb[0].mxu0 %v1232
        %v1375 = vpop.f32.mrb[0].mxu0
        %v1376 = vadd.f32 0.0, %v1375
        %v1377 = vpop.f32.mrb[0].mxu0
        %v1378 = vadd.f32 0.0, %v1377
        %v1379 = vpop.f32.mrb[0].mxu0
        %v1380 = vpop.f32.mrb[0].mxu0
        %1381 = vdwg.mxu0
        %1382 = vmatprep.subr.bf16.mxu0 %v1257
        %1383 = vmatpush1.bf16.msra.mxu0 %v1254
        %1384 = vmatprep.subr.bf16.mxu0 0
        %1385 = vmatpush1.bf16.msra.mxu0 0
        %1386 = vmatprep.subr.bf16.mxu0 0
        %1387 = vmatpush1.bf16.msra.mxu0 0
        %1388 = vmatprep.subr.bf16.mxu0 0
        %1389 = vmatpush1.bf16.msra.mxu0 0
        %1390 = vmatprep.subr.bf16.mxu0 0
        %1391 = vmatpush1.bf16.msra.mxu0 0
        %1392 = vmatprep.subr.bf16.mxu0 0
        %1393 = vmatpush1.bf16.msra.mxu0 0
        %1394 = vmatprep.subr.bf16.mxu0 0
        %1395 = vmatpush1.bf16.msra.mxu0 0
        %1396 = vmatprep.subr.bf16.mxu0 0
        %1397 = vmatpush1.bf16.msra.mxu0 0
        %1398 = vmatprep.subr.bf16.mxu0 0
        %1399 = vmatpush1.bf16.msra.mxu0 0
        %1400 = vmatprep.subr.bf16.mxu0 0
        %1401 = vmatpush1.bf16.msra.mxu0 0
        %1402 = vmatprep.subr.bf16.mxu0 0
        %1403 = vmatpush1.bf16.msra.mxu0 0
        %1404 = vmatprep.subr.bf16.mxu0 0
        %1405 = vmatpush1.bf16.msra.mxu0 0
        %1406 = vmatprep.subr.bf16.mxu0 0
        %1407 = vmatpush1.bf16.msra.mxu0 0
        %1408 = vmatprep.subr.bf16.mxu0 0
        %1409 = vmatpush1.bf16.msra.mxu0 0
        %1410 = vmatprep.subr.bf16.mxu0 0
        %1411 = vmatpush1.bf16.msra.mxu0 0
        %1412 = vmatprep.subr.bf16.mxu0 0
        %1413 = vmatpush1.bf16.msra.mxu0 0
        %1414 = vmatprep.mubr.bf16.mxu0 0
        %1415 = vmatmul.mubr.bf16.gmra.mrb[0].mxu0 %v1232
        %v1416 = vpop.f32.mrb[0].mxu0
        %v1417 = vadd.f32 0.0, %v1416
        %v1418 = vpop.f32.mrb[0].mxu0
        %v1419 = vadd.f32 0.0, %v1418
        %v1420 = vpop.f32.mrb[0].mxu0
        %v1421 = vpop.f32.mrb[0].mxu0
        %1422 = vdwg.mxu0
        %v1424 = vsel %vm1230, %v1173, 0
        %v1427 = vsel %vm1234, %v1195, 0
        %v1430 = vsel %vm1234, %v1196, 0
        %v1433 = vsel %vm1234, %v1197, 0
        %v1436 = vsel %vm1234, %v1198, 0
        %v1439 = vsel %vm1234, %v1199, 0
        %v1442 = vsel %vm1234, %v1200, 0
        %v1445 = vsel %vm1234, %v1201, 0
        %v1448 = vsel %vm1234, %v1202, 0
        %1450 = vmatprep.subr.bf16.mxu0 %v1430
        %1451 = vmatpush1.bf16.msra.mxu0 %v1427
        %1452 = vmatprep.subr.bf16.mxu0 0
        %1453 = vmatpush1.bf16.msra.mxu0 0
        %1454 = vmatprep.subr.bf16.mxu0 0
        %1455 = vmatpush1.bf16.msra.mxu0 0
        %1456 = vmatprep.subr.bf16.mxu0 0
        %1457 = vmatpush1.bf16.msra.mxu0 0
        %1458 = vmatprep.subr.bf16.mxu0 0
        %1459 = vmatpush1.bf16.msra.mxu0 0
        %1460 = vmatprep.subr.bf16.mxu0 0
        %1461 = vmatpush1.bf16.msra.mxu0 0
        %1462 = vmatprep.subr.bf16.mxu0 0
        %1463 = vmatpush1.bf16.msra.mxu0 0
        %1464 = vmatprep.subr.bf16.mxu0 0
        %1465 = vmatpush1.bf16.msra.mxu0 0
        %1466 = vmatprep.subr.bf16.mxu0 0
        %1467 = vmatpush1.bf16.msra.mxu0 0
        %1468 = vmatprep.subr.bf16.mxu0 0
        %1469 = vmatpush1.bf16.msra.mxu0 0
        %1470 = vmatprep.subr.bf16.mxu0 0
        %1471 = vmatpush1.bf16.msra.mxu0 0
        %1472 = vmatprep.subr.bf16.mxu0 0
        %1473 = vmatpush1.bf16.msra.mxu0 0
        %1474 = vmatprep.subr.bf16.mxu0 0
        %1475 = vmatpush1.bf16.msra.mxu0 0
        %1476 = vmatprep.subr.bf16.mxu0 0
        %1477 = vmatpush1.bf16.msra.mxu0 0
        %1478 = vmatprep.subr.bf16.mxu0 0
        %1479 = vmatpush1.bf16.msra.mxu0 0
        %1480 = vmatprep.subr.bf16.mxu0 0
        %1481 = vmatpush1.bf16.msra.mxu0 0
        %1482 = vmatprep.mubr.bf16.mxu0 0
        %1483 = vmatmul.mubr.bf16.gmra.mrb[0].mxu0 %v1424
        %v1484 = vpop.f32.mrb[0].mxu0
        %v1485 = vadd.f32 %v1294, %v1484
        %v1486 = vpop.f32.mrb[0].mxu0
        %v1487 = vadd.f32 %v1296, %v1486
        %v1488 = vpop.f32.mrb[0].mxu0
        %v1489 = vpop.f32.mrb[0].mxu0
        %1490 = vdwg.mxu0
        %1491 = vmatprep.subr.bf16.mxu0 %v1436
        %1492 = vmatpush1.bf16.msra.mxu0 %v1433
        %1493 = vmatprep.subr.bf16.mxu0 0
        %1494 = vmatpush1.bf16.msra.mxu0 0
        %1495 = vmatprep.subr.bf16.mxu0 0
        %1496 = vmatpush1.bf16.msra.mxu0 0
        %1497 = vmatprep.subr.bf16.mxu0 0
        %1498 = vmatpush1.bf16.msra.mxu0 0
        %1499 = vmatprep.subr.bf16.mxu0 0
        %1500 = vmatpush1.bf16.msra.mxu0 0
        %1501 = vmatprep.subr.bf16.mxu0 0
        %1502 = vmatpush1.bf16.msra.mxu0 0
        %1503 = vmatprep.subr.bf16.mxu0 0
        %1504 = vmatpush1.bf16.msra.mxu0 0
        %1505 = vmatprep.subr.bf16.mxu0 0
        %1506 = vmatpush1.bf16.msra.mxu0 0
        %1507 = vmatprep.subr.bf16.mxu0 0
        %1508 = vmatpush1.bf16.msra.mxu0 0
        %1509 = vmatprep.subr.bf16.mxu0 0
        %1510 = vmatpush1.bf16.msra.mxu0 0
        %1511 = vmatprep.subr.bf16.mxu0 0
        %1512 = vmatpush1.bf16.msra.mxu0 0
        %1513 = vmatprep.subr.bf16.mxu0 0
        %1514 = vmatpush1.bf16.msra.mxu0 0
        %1515 = vmatprep.subr.bf16.mxu0 0
        %1516 = vmatpush1.bf16.msra.mxu0 0
        %1517 = vmatprep.subr.bf16.mxu0 0
        %1518 = vmatpush1.bf16.msra.mxu0 0
        %1519 = vmatprep.subr.bf16.mxu0 0
        %1520 = vmatpush1.bf16.msra.mxu0 0
        %1521 = vmatprep.subr.bf16.mxu0 0
        %1522 = vmatpush1.bf16.msra.mxu0 0
        %1523 = vmatprep.mubr.bf16.mxu0 0
        %1524 = vmatmul.mubr.bf16.gmra.mrb[0].mxu0 %v1424
        %v1525 = vpop.f32.mrb[0].mxu0
        %v1526 = vadd.f32 %v1335, %v1525
        %v1527 = vpop.f32.mrb[0].mxu0
        %v1528 = vadd.f32 %v1337, %v1527
        %v1529 = vpop.f32.mrb[0].mxu0
        %v1530 = vpop.f32.mrb[0].mxu0
        %1531 = vdwg.mxu0
        %1532 = vmatprep.subr.bf16.mxu0 %v1442
        %1533 = vmatpush1.bf16.msra.mxu0 %v1439
        %1534 = vmatprep.subr.bf16.mxu0 0
        %1535 = vmatpush1.bf16.msra.mxu0 0
        %1536 = vmatprep.subr.bf16.mxu0 0
        %1537 = vmatpush1.bf16.msra.mxu0 0
        %1538 = vmatprep.subr.bf16.mxu0 0
        %1539 = vmatpush1.bf16.msra.mxu0 0
        %1540 = vmatprep.subr.bf16.mxu0 0
        %1541 = vmatpush1.bf16.msra.mxu0 0
        %1542 = vmatprep.subr.bf16.mxu0 0
        %1543 = vmatpush1.bf16.msra.mxu0 0
        %1544 = vmatprep.subr.bf16.mxu0 0
        %1545 = vmatpush1.bf16.msra.mxu0 0
        %1546 = vmatprep.subr.bf16.mxu0 0
        %1547 = vmatpush1.bf16.msra.mxu0 0
        %1548 = vmatprep.subr.bf16.mxu0 0
        %1549 = vmatpush1.bf16.msra.mxu0 0
        %1550 = vmatprep.subr.bf16.mxu0 0
        %1551 = vmatpush1.bf16.msra.mxu0 0
        %1552 = vmatprep.subr.bf16.mxu0 0
        %1553 = vmatpush1.bf16.msra.mxu0 0
        %1554 = vmatprep.subr.bf16.mxu0 0
        %1555 = vmatpush1.bf16.msra.mxu0 0
        %1556 = vmatprep.subr.bf16.mxu0 0
        %1557 = vmatpush1.bf16.msra.mxu0 0
        %1558 = vmatprep.subr.bf16.mxu0 0
        %1559 = vmatpush1.bf16.msra.mxu0 0
        %1560 = vmatprep.subr.bf16.mxu0 0
        %1561 = vmatpush1.bf16.msra.mxu0 0
        %1562 = vmatprep.subr.bf16.mxu0 0
        %1563 = vmatpush1.bf16.msra.mxu0 0
        %1564 = vmatprep.mubr.bf16.mxu0 0
        %1565 = vmatmul.mubr.bf16.gmra.mrb[0].mxu0 %v1424
        %v1566 = vpop.f32.mrb[0].mxu0
        %v1567 = vadd.f32 %v1376, %v1566
        %v1568 = vpop.f32.mrb[0].mxu0
        %v1569 = vadd.f32 %v1378, %v1568
        %v1570 = vpop.f32.mrb[0].mxu0
        %v1571 = vpop.f32.mrb[0].mxu0
        %1572 = vdwg.mxu0
        %1573 = vmatprep.subr.bf16.mxu0 %v1448
        %1574 = vmatpush1.bf16.msra.mxu0 %v1445
        %1575 = vmatprep.subr.bf16.mxu0 0
        %1576 = vmatpush1.bf16.msra.mxu0 0
        %1577 = vmatprep.subr.bf16.mxu0 0
        %1578 = vmatpush1.bf16.msra.mxu0 0
        %1579 = vmatprep.subr.bf16.mxu0 0
        %1580 = vmatpush1.bf16.msra.mxu0 0
        %1581 = vmatprep.subr.bf16.mxu0 0
        %1582 = vmatpush1.bf16.msra.mxu0 0
        %1583 = vmatprep.subr.bf16.mxu0 0
        %1584 = vmatpush1.bf16.msra.mxu0 0
        %1585 = vmatprep.subr.bf16.mxu0 0
        %1586 = vmatpush1.bf16.msra.mxu0 0
        %1587 = vmatprep.subr.bf16.mxu0 0
        %1588 = vmatpush1.bf16.msra.mxu0 0
        %1589 = vmatprep.subr.bf16.mxu0 0
        %1590 = vmatpush1.bf16.msra.mxu0 0
        %1591 = vmatprep.subr.bf16.mxu0 0
        %1592 = vmatpush1.bf16.msra.mxu0 0
        %1593 = vmatprep.subr.bf16.mxu0 0
        %1594 = vmatpush1.bf16.msra.mxu0 0
        %1595 = vmatprep.subr.bf16.mxu0 0
        %1596 = vmatpush1.bf16.msra.mxu0 0
        %1597 = vmatprep.subr.bf16.mxu0 0
        %1598 = vmatpush1.bf16.msra.mxu0 0
        %1599 = vmatprep.subr.bf16.mxu0 0
        %1600 = vmatpush1.bf16.msra.mxu0 0
        %1601 = vmatprep.subr.bf16.mxu0 0
        %1602 = vmatpush1.bf16.msra.mxu0 0
        %1603 = vmatprep.subr.bf16.mxu0 0
        %1604 = vmatpush1.bf16.msra.mxu0 0
        %1605 = vmatprep.mubr.bf16.mxu0 0
        %1606 = vmatmul.mubr.bf16.gmra.mrb[0].mxu0 %v1424
        %v1607 = vpop.f32.mrb[0].mxu0
        %v1608 = vadd.f32 %v1417, %v1607
        %v1609 = vpop.f32.mrb[0].mxu0
        %v1610 = vadd.f32 %v1419, %v1609
        %v1611 = vpop.f32.mrb[0].mxu0
        %v1612 = vpop.f32.mrb[0].mxu0
        %1613 = vdwg.mxu0
        %s1614 = scalar_lea.vmem %s3, 8
        %v1615 = vld [vmem:[%s1614] sm:$0xf]
        %1616 = vrot.lane.b32.xlu0 %v1195, 124
        %v1617 = vpop.permute.xlu0 %1616
        %1618 = vrot.lane.b32.xlu0 %v1196, 124
        %v1619 = vpop.permute.xlu0 %1618
        %1620 = vrot.lane.b32.xlu0 %v1197, 124
        %v1621 = vpop.permute.xlu0 %1620
        %1622 = vrot.lane.b32.xlu0 %v1198, 124
        %v1623 = vpop.permute.xlu0 %1622
        %1624 = vrot.lane.b32.xlu0 %v1199, 124
        %v1625 = vpop.permute.xlu0 %1624
        %1626 = vrot.lane.b32.xlu0 %v1200, 124
        %v1627 = vpop.permute.xlu0 %1626
        %1628 = vrot.lane.b32.xlu0 %v1201, 124
        %v1629 = vpop.permute.xlu0 %1628
        %1630 = vrot.lane.b32.xlu0 %v1202, 124
        %v1631 = vpop.permute.xlu0 %1630
        %1632 = vrot.lane.b32.xlu0 %v1203, 124
        %v1633 = vpop.permute.xlu0 %1632
        %v1634 = vsel %vm881, %v1617, %v1619
        %v1635 = vsel %vm881, %v1619, %v1621
        %v1636 = vsel %vm881, %v1621, %v1623
        %v1637 = vsel %vm881, %v1623, %v1625
        %v1638 = vsel %vm881, %v1625, %v1627
        %v1639 = vsel %vm881, %v1627, %v1629
        %v1640 = vsel %vm881, %v1629, %v1631
        %v1641 = vsel %vm881, %v1631, %v1633
        %v1643 = vsel %vm1230, %v1615, 0
        %v1646 = vsel %vm1234, %v1634, 0
        %v1649 = vsel %vm1234, %v1635, 0
        %v1652 = vsel %vm1234, %v1636, 0
        %v1655 = vsel %vm1234, %v1637, 0
        %v1658 = vsel %vm1234, %v1638, 0
        %v1661 = vsel %vm1234, %v1639, 0
        %v1664 = vsel %vm1234, %v1640, 0
        %v1667 = vsel %vm1234, %v1641, 0
        %1669 = vmatprep.subr.bf16.mxu0 %v1649
        %1670 = vmatpush1.bf16.msra.mxu0 %v1646
        %1671 = vmatprep.subr.bf16.mxu0 0
        %1672 = vmatpush1.bf16.msra.mxu0 0
        %1673 = vmatprep.subr.bf16.mxu0 0
        %1674 = vmatpush1.bf16.msra.mxu0 0
        %1675 = vmatprep.subr.bf16.mxu0 0
        %1676 = vmatpush1.bf16.msra.mxu0 0
        %1677 = vmatprep.subr.bf16.mxu0 0
        %1678 = vmatpush1.bf16.msra.mxu0 0
        %1679 = vmatprep.subr.bf16.mxu0 0
        %1680 = vmatpush1.bf16.msra.mxu0 0
        %1681 = vmatprep.subr.bf16.mxu0 0
        %1682 = vmatpush1.bf16.msra.mxu0 0
        %1683 = vmatprep.subr.bf16.mxu0 0
        %1684 = vmatpush1.bf16.msra.mxu0 0
        %1685 = vmatprep.subr.bf16.mxu0 0
        %1686 = vmatpush1.bf16.msra.mxu0 0
        %1687 = vmatprep.subr.bf16.mxu0 0
        %1688 = vmatpush1.bf16.msra.mxu0 0
        %1689 = vmatprep.subr.bf16.mxu0 0
        %1690 = vmatpush1.bf16.msra.mxu0 0
        %1691 = vmatprep.subr.bf16.mxu0 0
        %1692 = vmatpush1.bf16.msra.mxu0 0
        %1693 = vmatprep.subr.bf16.mxu0 0
        %1694 = vmatpush1.bf16.msra.mxu0 0
        %1695 = vmatprep.subr.bf16.mxu0 0
        %1696 = vmatpush1.bf16.msra.mxu0 0
        %1697 = vmatprep.subr.bf16.mxu0 0
        %1698 = vmatpush1.bf16.msra.mxu0 0
        %1699 = vmatprep.subr.bf16.mxu0 0
        %1700 = vmatpush1.bf16.msra.mxu0 0
        %1701 = vmatprep.mubr.bf16.mxu0 0
        %1702 = vmatmul.mubr.bf16.gmra.mrb[0].mxu0 %v1643
        %v1703 = vpop.f32.mrb[0].mxu0
        %v1704 = vadd.f32 0.0, %v1703
        %v1705 = vpop.f32.mrb[0].mxu0
        %v1706 = vadd.f32 0.0, %v1705
        %v1707 = vpop.f32.mrb[0].mxu0
        %v1708 = vpop.f32.mrb[0].mxu0
        %1709 = vdwg.mxu0
        %1710 = vmatprep.subr.bf16.mxu0 %v1655
        %1711 = vmatpush1.bf16.msra.mxu0 %v1652
        %1712 = vmatprep.subr.bf16.mxu0 0
        %1713 = vmatpush1.bf16.msra.mxu0 0
        %1714 = vmatprep.subr.bf16.mxu0 0
        %1715 = vmatpush1.bf16.msra.mxu0 0
        %1716 = vmatprep.subr.bf16.mxu0 0
        %1717 = vmatpush1.bf16.msra.mxu0 0
        %1718 = vmatprep.subr.bf16.mxu0 0
        %1719 = vmatpush1.bf16.msra.mxu0 0
        %1720 = vmatprep.subr.bf16.mxu0 0
        %1721 = vmatpush1.bf16.msra.mxu0 0
        %1722 = vmatprep.subr.bf16.mxu0 0
        %1723 = vmatpush1.bf16.msra.mxu0 0
        %1724 = vmatprep.subr.bf16.mxu0 0
        %1725 = vmatpush1.bf16.msra.mxu0 0
        %1726 = vmatprep.subr.bf16.mxu0 0
        %1727 = vmatpush1.bf16.msra.mxu0 0
        %1728 = vmatprep.subr.bf16.mxu0 0
        %1729 = vmatpush1.bf16.msra.mxu0 0
        %1730 = vmatprep.subr.bf16.mxu0 0
        %1731 = vmatpush1.bf16.msra.mxu0 0
        %1732 = vmatprep.subr.bf16.mxu0 0
        %1733 = vmatpush1.bf16.msra.mxu0 0
        %1734 = vmatprep.subr.bf16.mxu0 0
        %1735 = vmatpush1.bf16.msra.mxu0 0
        %1736 = vmatprep.subr.bf16.mxu0 0
        %1737 = vmatpush1.bf16.msra.mxu0 0
        %1738 = vmatprep.subr.bf16.mxu0 0
        %1739 = vmatpush1.bf16.msra.mxu0 0
        %1740 = vmatprep.subr.bf16.mxu0 0
        %1741 = vmatpush1.bf16.msra.mxu0 0
        %1742 = vmatprep.mubr.bf16.mxu0 0
        %1743 = vmatmul.mubr.bf16.gmra.mrb[0].mxu0 %v1643
        %v1744 = vpop.f32.mrb[0].mxu0
        %v1745 = vadd.f32 0.0, %v1744
        %v1746 = vpop.f32.mrb[0].mxu0
        %v1747 = vadd.f32 0.0, %v1746
        %v1748 = vpop.f32.mrb[0].mxu0
        %v1749 = vpop.f32.mrb[0].mxu0
        %1750 = vdwg.mxu0
        %1751 = vmatprep.subr.bf16.mxu0 %v1661
        %1752 = vmatpush1.bf16.msra.mxu0 %v1658
        %1753 = vmatprep.subr.bf16.mxu0 0
        %1754 = vmatpush1.bf16.msra.mxu0 0
        %1755 = vmatprep.subr.bf16.mxu0 0
        %1756 = vmatpush1.bf16.msra.mxu0 0
        %1757 = vmatprep.subr.bf16.mxu0 0
        %1758 = vmatpush1.bf16.msra.mxu0 0
        %1759 = vmatprep.subr.bf16.mxu0 0
        %1760 = vmatpush1.bf16.msra.mxu0 0
        %1761 = vmatprep.subr.bf16.mxu0 0
        %1762 = vmatpush1.bf16.msra.mxu0 0
        %1763 = vmatprep.subr.bf16.mxu0 0
        %1764 = vmatpush1.bf16.msra.mxu0 0
        %1765 = vmatprep.subr.bf16.mxu0 0
        %1766 = vmatpush1.bf16.msra.mxu0 0
        %1767 = vmatprep.subr.bf16.mxu0 0
        %1768 = vmatpush1.bf16.msra.mxu0 0
        %1769 = vmatprep.subr.bf16.mxu0 0
        %1770 = vmatpush1.bf16.msra.mxu0 0
        %1771 = vmatprep.subr.bf16.mxu0 0
        %1772 = vmatpush1.bf16.msra.mxu0 0
        %1773 = vmatprep.subr.bf16.mxu0 0
        %1774 = vmatpush1.bf16.msra.mxu0 0
        %1775 = vmatprep.subr.bf16.mxu0 0
        %1776 = vmatpush1.bf16.msra.mxu0 0
        %1777 = vmatprep.subr.bf16.mxu0 0
        %1778 = vmatpush1.bf16.msra.mxu0 0
        %1779 = vmatprep.subr.bf16.mxu0 0
        %1780 = vmatpush1.bf16.msra.mxu0 0
        %1781 = vmatprep.subr.bf16.mxu0 0
        %1782 = vmatpush1.bf16.msra.mxu0 0
        %1783 = vmatprep.mubr.bf16.mxu0 0
        %1784 = vmatmul.mubr.bf16.gmra.mrb[0].mxu0 %v1643
        %v1785 = vpop.f32.mrb[0].mxu0
        %v1786 = vadd.f32 0.0, %v1785
        %v1787 = vpop.f32.mrb[0].mxu0
        %v1788 = vadd.f32 0.0, %v1787
        %v1789 = vpop.f32.mrb[0].mxu0
        %v1790 = vpop.f32.mrb[0].mxu0
        %1791 = vdwg.mxu0
        %1792 = vmatprep.subr.bf16.mxu0 %v1667
        %1793 = vmatpush1.bf16.msra.mxu0 %v1664
        %1794 = vmatprep.subr.bf16.mxu0 0
        %1795 = vmatpush1.bf16.msra.mxu0 0
        %1796 = vmatprep.subr.bf16.mxu0 0
        %1797 = vmatpush1.bf16.msra.mxu0 0
        %1798 = vmatprep.subr.bf16.mxu0 0
        %1799 = vmatpush1.bf16.msra.mxu0 0
        %1800 = vmatprep.subr.bf16.mxu0 0
        %1801 = vmatpush1.bf16.msra.mxu0 0
        %1802 = vmatprep.subr.bf16.mxu0 0
        %1803 = vmatpush1.bf16.msra.mxu0 0
        %1804 = vmatprep.subr.bf16.mxu0 0
        %1805 = vmatpush1.bf16.msra.mxu0 0
        %1806 = vmatprep.subr.bf16.mxu0 0
        %1807 = vmatpush1.bf16.msra.mxu0 0
        %1808 = vmatprep.subr.bf16.mxu0 0
        %1809 = vmatpush1.bf16.msra.mxu0 0
        %1810 = vmatprep.subr.bf16.mxu0 0
        %1811 = vmatpush1.bf16.msra.mxu0 0
        %1812 = vmatprep.subr.bf16.mxu0 0
        %1813 = vmatpush1.bf16.msra.mxu0 0
        %1814 = vmatprep.subr.bf16.mxu0 0
        %1815 = vmatpush1.bf16.msra.mxu0 0
        %1816 = vmatprep.subr.bf16.mxu0 0
        %1817 = vmatpush1.bf16.msra.mxu0 0
        %1818 = vmatprep.subr.bf16.mxu0 0
        %1819 = vmatpush1.bf16.msra.mxu0 0
        %1820 = vmatprep.subr.bf16.mxu0 0
        %1821 = vmatpush1.bf16.msra.mxu0 0
        %1822 = vmatprep.subr.bf16.mxu0 0
        %1823 = vmatpush1.bf16.msra.mxu0 0
        %1824 = vmatprep.mubr.bf16.mxu0 0
        %1825 = vmatmul.mubr.bf16.gmra.mrb[0].mxu0 %v1643
        %v1826 = vpop.f32.mrb[0].mxu0
        %v1827 = vadd.f32 0.0, %v1826
        %v1828 = vpop.f32.mrb[0].mxu0
        %v1829 = vadd.f32 0.0, %v1828
        %v1830 = vpop.f32.mrb[0].mxu0
        %v1831 = vpop.f32.mrb[0].mxu0
        %1832 = vdwg.mxu0
        %v1833 = vadd.f32 %v1485, %v1704
        %v1834 = vadd.f32 %v1487, %v1706
        %v1835 = vadd.f32 %v1526, %v1745
        %v1836 = vadd.f32 %v1528, %v1747
        %v1837 = vadd.f32 %v1567, %v1786
        %v1838 = vadd.f32 %v1569, %v1788
        %v1839 = vadd.f32 %v1608, %v1827
        %v1840 = vadd.f32 %v1610, %v1829
        %v1841 = vld [vmem:[%s4] sm:$0xff]
        %1843 = vset.pattern.permute.xlu0 0
        %1844 = vperm.xlu0 %1843, %v1841
        %v1845 = vpop.permute.xlu0 %1844
        %v1847 = vadd.f32 %v1833, %v1845
        %v1848 = vadd.f32 %v1834, %v1845
        %v1849 = vadd.f32 %v1835, %v1845
        %v1850 = vadd.f32 %v1836, %v1845
        %v1851 = vadd.f32 %v1837, %v1845
        %v1852 = vadd.f32 %v1838, %v1845
        %v1853 = vadd.f32 %v1839, %v1845
        %v1854 = vadd.f32 %v1840, %v1845
        %v1855 = vmax.f32 %v1847, 0.0
        %v1856 = vmax.f32 %v1848, 0.0
        %v1857 = vmax.f32 %v1849, 0.0
        %v1858 = vmax.f32 %v1850, 0.0
        %v1859 = vmax.f32 %v1851, 0.0
        %v1860 = vmax.f32 %v1852, 0.0
        %v1861 = vmax.f32 %v1853, 0.0
        %v1862 = vmax.f32 %v1854, 0.0
        %v1863 = vld [vmem:[%s5] sm:$0xf]
        %v1864 = vld [vmem:[%s6] sm:$0xff]
        %1866 = vset.pattern.permute.xlu0 0
        %1867 = vperm.xlu0 %1866, %v1864
        %v1868 = vpop.permute.xlu0 %1867
        %v1870 = vcombine.high %v324, %v324
        %v1872 = vunpack.c.l.s4 1983009808
        %v1873 = vunpack.c.0.s8 %v1872
        %v1874 = vlaneseq
        %v1875 = vshrl.u32 %v1874, 7
        %v1876 = vsub.s32 %v1873, %v1875
        %v1877 = vrot.slane %v324, %v1876
        %v1879 = vunpack.c.l.s4 1983009808
        %v1880 = vunpack.c.0.s8 %v1879
        %v1881 = vlaneseq
        %v1882 = vshrl.u32 %v1881, 7
        %v1883 = vsub.s32 %v1880, %v1882
        %v1884 = vrot.slane %v1870, %v1883
        %v1885 = vcombine.high %v1877, %v1877
        %v1886 = vcombine.high %v1884, %v1884
        %v1887 = vcombine.high %v325, %v325
        %v1889 = vunpack.c.l.s4 1983009808
        %v1890 = vunpack.c.0.s8 %v1889
        %v1891 = vlaneseq
        %v1892 = vshrl.u32 %v1891, 7
        %v1893 = vsub.s32 %v1890, %v1892
        %v1894 = vrot.slane %v325, %v1893
        %v1896 = vunpack.c.l.s4 1983009808
        %v1897 = vunpack.c.0.s8 %v1896
        %v1898 = vlaneseq
        %v1899 = vshrl.u32 %v1898, 7
        %v1900 = vsub.s32 %v1897, %v1899
        %v1901 = vrot.slane %v1887, %v1900
        %v1902 = vcombine.high %v1894, %v1894
        %v1903 = vcombine.high %v1901, %v1901
        %v1905 = vsel %vm430, %v1863, 0
        %v1908 = vsel %vm434, %v1877, 0
        %v1911 = vsel %vm434, %v1885, 0
        %v1914 = vsel %vm434, %v1884, 0
        %v1917 = vsel %vm434, %v1886, 0
        %v1920 = vsel %vm434, %v1894, 0
        %v1923 = vsel %vm434, %v1902, 0
        %v1926 = vsel %vm434, %v1901, 0
        %v1929 = vsel %vm434, %v1903, 0
        %1931 = vmatprep.subr.bf16.mxu0 %v1911
        %1932 = vmatpush1.bf16.msra.mxu0 %v1908
        %1933 = vmatprep.subr.bf16.mxu0 0
        %1934 = vmatpush1.bf16.msra.mxu0 0
        %1935 = vmatprep.subr.bf16.mxu0 0
        %1936 = vmatpush1.bf16.msra.mxu0 0
        %1937 = vmatprep.subr.bf16.mxu0 0
        %1938 = vmatpush1.bf16.msra.mxu0 0
        %1939 = vmatprep.subr.bf16.mxu0 0
        %1940 = vmatpush1.bf16.msra.mxu0 0
        %1941 = vmatprep.subr.bf16.mxu0 0
        %1942 = vmatpush1.bf16.msra.mxu0 0
        %1943 = vmatprep.subr.bf16.mxu0 0
        %1944 = vmatpush1.bf16.msra.mxu0 0
        %1945 = vmatprep.subr.bf16.mxu0 0
        %1946 = vmatpush1.bf16.msra.mxu0 0
        %1947 = vmatprep.subr.bf16.mxu0 0
        %1948 = vmatpush1.bf16.msra.mxu0 0
        %1949 = vmatprep.subr.bf16.mxu0 0
        %1950 = vmatpush1.bf16.msra.mxu0 0
        %1951 = vmatprep.subr.bf16.mxu0 0
        %1952 = vmatpush1.bf16.msra.mxu0 0
        %1953 = vmatprep.subr.bf16.mxu0 0
        %1954 = vmatpush1.bf16.msra.mxu0 0
        %1955 = vmatprep.subr.bf16.mxu0 0
        %1956 = vmatpush1.bf16.msra.mxu0 0
        %1957 = vmatprep.subr.bf16.mxu0 0
        %1958 = vmatpush1.bf16.msra.mxu0 0
        %1959 = vmatprep.subr.bf16.mxu0 0
        %1960 = vmatpush1.bf16.msra.mxu0 0
        %1961 = vmatprep.subr.bf16.mxu0 0
        %1962 = vmatpush1.bf16.msra.mxu0 0
        %1963 = vmatprep.mubr.bf16.mxu0 0
        %1964 = vmatmul.mubr.bf16.gmra.mrb[0].mxu0 %v1905
        %v1965 = vpop.f32.mrb[0].mxu0
        %v1966 = vadd.f32 %v1868, %v1965
        %v1967 = vpop.f32.mrb[0].mxu0
        %v1968 = vadd.f32 %v1868, %v1967
        %v1969 = vpop.f32.mrb[0].mxu0
        %v1970 = vpop.f32.mrb[0].mxu0
        %1971 = vdwg.mxu0
        %1972 = vmatprep.subr.bf16.mxu0 %v1917
        %1973 = vmatpush1.bf16.msra.mxu0 %v1914
        %1974 = vmatprep.subr.bf16.mxu0 0
        %1975 = vmatpush1.bf16.msra.mxu0 0
        %1976 = vmatprep.subr.bf16.mxu0 0
        %1977 = vmatpush1.bf16.msra.mxu0 0
        %1978 = vmatprep.subr.bf16.mxu0 0
        %1979 = vmatpush1.bf16.msra.mxu0 0
        %1980 = vmatprep.subr.bf16.mxu0 0
        %1981 = vmatpush1.bf16.msra.mxu0 0
        %1982 = vmatprep.subr.bf16.mxu0 0
        %1983 = vmatpush1.bf16.msra.mxu0 0
        %1984 = vmatprep.subr.bf16.mxu0 0
        %1985 = vmatpush1.bf16.msra.mxu0 0
        %1986 = vmatprep.subr.bf16.mxu0 0
        %1987 = vmatpush1.bf16.msra.mxu0 0
        %1988 = vmatprep.subr.bf16.mxu0 0
        %1989 = vmatpush1.bf16.msra.mxu0 0
        %1990 = vmatprep.subr.bf16.mxu0 0
        %1991 = vmatpush1.bf16.msra.mxu0 0
        %1992 = vmatprep.subr.bf16.mxu0 0
        %1993 = vmatpush1.bf16.msra.mxu0 0
        %1994 = vmatprep.subr.bf16.mxu0 0
        %1995 = vmatpush1.bf16.msra.mxu0 0
        %1996 = vmatprep.subr.bf16.mxu0 0
        %1997 = vmatpush1.bf16.msra.mxu0 0
        %1998 = vmatprep.subr.bf16.mxu0 0
        %1999 = vmatpush1.bf16.msra.mxu0 0
        %2000 = vmatprep.subr.bf16.mxu0 0
        %2001 = vmatpush1.bf16.msra.mxu0 0
        %2002 = vmatprep.subr.bf16.mxu0 0
        %2003 = vmatpush1.bf16.msra.mxu0 0
        %2004 = vmatprep.mubr.bf16.mxu0 0
        %2005 = vmatmul.mubr.bf16.gmra.mrb[0].mxu0 %v1905
        %v2006 = vpop.f32.mrb[0].mxu0
        %v2007 = vadd.f32 %v1868, %v2006
        %v2008 = vpop.f32.mrb[0].mxu0
        %v2009 = vadd.f32 %v1868, %v2008
        %v2010 = vpop.f32.mrb[0].mxu0
        %v2011 = vpop.f32.mrb[0].mxu0
        %2012 = vdwg.mxu0
        %2013 = vmatprep.subr.bf16.mxu0 %v1923
        %2014 = vmatpush1.bf16.msra.mxu0 %v1920
        %2015 = vmatprep.subr.bf16.mxu0 0
        %2016 = vmatpush1.bf16.msra.mxu0 0
        %2017 = vmatprep.subr.bf16.mxu0 0
        %2018 = vmatpush1.bf16.msra.mxu0 0
        %2019 = vmatprep.subr.bf16.mxu0 0
        %2020 = vmatpush1.bf16.msra.mxu0 0
        %2021 = vmatprep.subr.bf16.mxu0 0
        %2022 = vmatpush1.bf16.msra.mxu0 0
        %2023 = vmatprep.subr.bf16.mxu0 0
        %2024 = vmatpush1.bf16.msra.mxu0 0
        %2025 = vmatprep.subr.bf16.mxu0 0
        %2026 = vmatpush1.bf16.msra.mxu0 0
        %2027 = vmatprep.subr.bf16.mxu0 0
        %2028 = vmatpush1.bf16.msra.mxu0 0
        %2029 = vmatprep.subr.bf16.mxu0 0
        %2030 = vmatpush1.bf16.msra.mxu0 0
        %2031 = vmatprep.subr.bf16.mxu0 0
        %2032 = vmatpush1.bf16.msra.mxu0 0
        %2033 = vmatprep.subr.bf16.mxu0 0
        %2034 = vmatpush1.bf16.msra.mxu0 0
        %2035 = vmatprep.subr.bf16.mxu0 0
        %2036 = vmatpush1.bf16.msra.mxu0 0
        %2037 = vmatprep.subr.bf16.mxu0 0
        %2038 = vmatpush1.bf16.msra.mxu0 0
        %2039 = vmatprep.subr.bf16.mxu0 0
        %2040 = vmatpush1.bf16.msra.mxu0 0
        %2041 = vmatprep.subr.bf16.mxu0 0
        %2042 = vmatpush1.bf16.msra.mxu0 0
        %2043 = vmatprep.subr.bf16.mxu0 0
        %2044 = vmatpush1.bf16.msra.mxu0 0
        %2045 = vmatprep.mubr.bf16.mxu0 0
        %2046 = vmatmul.mubr.bf16.gmra.mrb[0].mxu0 %v1905
        %v2047 = vpop.f32.mrb[0].mxu0
        %v2048 = vadd.f32 %v1868, %v2047
        %v2049 = vpop.f32.mrb[0].mxu0
        %v2050 = vadd.f32 %v1868, %v2049
        %v2051 = vpop.f32.mrb[0].mxu0
        %v2052 = vpop.f32.mrb[0].mxu0
        %2053 = vdwg.mxu0
        %2054 = vmatprep.subr.bf16.mxu0 %v1929
        %2055 = vmatpush1.bf16.msra.mxu0 %v1926
        %2056 = vmatprep.subr.bf16.mxu0 0
        %2057 = vmatpush1.bf16.msra.mxu0 0
        %2058 = vmatprep.subr.bf16.mxu0 0
        %2059 = vmatpush1.bf16.msra.mxu0 0
        %2060 = vmatprep.subr.bf16.mxu0 0
        %2061 = vmatpush1.bf16.msra.mxu0 0
        %2062 = vmatprep.subr.bf16.mxu0 0
        %2063 = vmatpush1.bf16.msra.mxu0 0
        %2064 = vmatprep.subr.bf16.mxu0 0
        %2065 = vmatpush1.bf16.msra.mxu0 0
        %2066 = vmatprep.subr.bf16.mxu0 0
        %2067 = vmatpush1.bf16.msra.mxu0 0
        %2068 = vmatprep.subr.bf16.mxu0 0
        %2069 = vmatpush1.bf16.msra.mxu0 0
        %2070 = vmatprep.subr.bf16.mxu0 0
        %2071 = vmatpush1.bf16.msra.mxu0 0
        %2072 = vmatprep.subr.bf16.mxu0 0
        %2073 = vmatpush1.bf16.msra.mxu0 0
        %2074 = vmatprep.subr.bf16.mxu0 0
        %2075 = vmatpush1.bf16.msra.mxu0 0
        %2076 = vmatprep.subr.bf16.mxu0 0
        %2077 = vmatpush1.bf16.msra.mxu0 0
        %2078 = vmatprep.subr.bf16.mxu0 0
        %2079 = vmatpush1.bf16.msra.mxu0 0
        %2080 = vmatprep.subr.bf16.mxu0 0
        %2081 = vmatpush1.bf16.msra.mxu0 0
        %2082 = vmatprep.subr.bf16.mxu0 0
        %2083 = vmatpush1.bf16.msra.mxu0 0
        %2084 = vmatprep.subr.bf16.mxu0 0
        %2085 = vmatpush1.bf16.msra.mxu0 0
        %2086 = vmatprep.mubr.bf16.mxu0 0
        %2087 = vmatmul.mubr.bf16.gmra.mrb[0].mxu0 %v1905
        %v2088 = vpop.f32.mrb[0].mxu0
        %v2089 = vadd.f32 %v1868, %v2088
        %v2090 = vpop.f32.mrb[0].mxu0
        %v2091 = vadd.f32 %v1868, %v2090
        %v2092 = vpop.f32.mrb[0].mxu0
        %v2093 = vpop.f32.mrb[0].mxu0
        %2094 = vdwg.mxu0
        %v2095 = vadd.f32 %v1855, %v1966
        %v2096 = vadd.f32 %v1856, %v1968
        %v2097 = vadd.f32 %v1857, %v2007
        %v2098 = vadd.f32 %v1858, %v2009
        %v2099 = vadd.f32 %v1859, %v2048
        %v2100 = vadd.f32 %v1860, %v2050
        %v2101 = vadd.f32 %v1861, %v2089
        %v2102 = vadd.f32 %v1862, %v2091
        %v2103 = vmax.f32 %v2095, 0.0
        %v2104 = vmax.f32 %v2096, 0.0
        %v2105 = vmax.f32 %v2097, 0.0
        %v2106 = vmax.f32 %v2098, 0.0
        %v2107 = vmax.f32 %v2099, 0.0
        %v2108 = vmax.f32 %v2100, 0.0
        %v2109 = vmax.f32 %v2101, 0.0
        %v2110 = vmax.f32 %v2102, 0.0
        %v2111 = vpack.c.bf16 %v2103, %v2103
        %v2112 = vpack.c.bf16 %v2104, %v2104
        %v2113 = vpack.c.bf16 %v2105, %v2105
        %v2114 = vpack.c.bf16 %v2106, %v2106
        %v2115 = vpack.c.bf16 %v2107, %v2107
        %v2116 = vpack.c.bf16 %v2108, %v2108
        %v2117 = vpack.c.bf16 %v2109, %v2109
        %v2118 = vpack.c.bf16 %v2110, %v2110
        %v2127 = vunpack.c.l.b16 %v2111
        %v2128 = vunpack.c.l.b16 %v2112
        %v2129 = vunpack.c.l.b16 %v2113
        %v2130 = vunpack.c.l.b16 %v2114
        %v2131 = vunpack.c.l.b16 %v2115
        %v2132 = vunpack.c.l.b16 %v2116
        %v2133 = vunpack.c.l.b16 %v2117
        %v2134 = vunpack.c.l.b16 %v2118
        %v2135 = vpack.c.b16 %v2128, %v2127
        %v2136 = vpack.c.b16 %v2130, %v2129
        %v2137 = vpack.c.b16 %v2132, %v2131
        %v2138 = vpack.c.b16 %v2134, %v2133
        %2143 = vst [vmem:[%s312] sm:$0xff] %v2135
        %2144 = vst [vmem:[%s312 + $0x8] sm:$0xff] %v2136
        %2145 = vst [vmem:[%s312 + $0x10] sm:$0xff] %v2137
        %2146 = vst [vmem:[%s312 + $0x18] sm:$0xff] %v2138
        %v2147 = vld [vmem:[#allocation2 + $0x10] sm:$0x3]
        %2148 = vst.msk [vmem:[#allocation2] sm:$0x3] %vm351, %v2147
        %v2149 = vld [vmem:[#allocation3 + $0x20] sm:$0xf]
        %2150 = vst.msk [vmem:[#allocation3] sm:$0xf] %vm1171, %v2149
        %s2151 = sand.u32 %s200, 1
        %s2152 = scalar_lea.sflag [#allocation6], %s2151
        %s2153 = sand.u32 %s200, 1
        %s2154 = smul.addr %s2153, 32
        %s2155 = scalar_lea.vmem [#allocation7], %s2154
        // Predicated region
        $region57: #{temporal_block.1} parent=47 // pred_check
          %p2156 = pneg %p210
        $region58: #{temporal_block.1} parent=47 // pred_check_branch
          %2158 = sbr.rel (%p2156) target = $region60
        $region59: #{temporal_block.1} parent=47 // pred_region
          %s2159 = smul.u32 8, %s29
          %s2161 = ssub.s32 512, 512
          %2162 = vsyncadd %s2152, %s2161
          %s2163 = smul.addr %s28, 16
          %s2164 = sadd.s32 %s2159, %s2163
          %s2165 = smul.addr %s2164, 64
          %s2166 = scalar_lea.hbm %s7, %s2165
          %s2168 = sshll.u32 %s2155, 4
          %s2169 = int_to_ptr.vmem [resolvable:$true] %s2168
          %2171 = dma.vmem_to_hbm [thread:$0]  %s2169, 512, %s2166, %s2152
        $region60: #{temporal_block.1} parent=47 // pred_fallthru
          _
      $region48: #{temporal_block.1} parent=5 // pred_fallthru
        _
      %p2172 = scmp.le.s32.totalorder 2, %s19
      // Predicated region
      $region61: #{temporal_block.1} parent=5 // pred_check
        %p2173 = pneg %p2172
      $region62: #{temporal_block.1} parent=5 // pred_check_branch
        %2175 = sbr.rel (%p2173) target = $region64
      $region63: #{temporal_block.1} parent=5 // pred_region
        %s2176 = ssub.s32 %s19, 2
        // Predicated region
        $region65: #{temporal_block.1} parent=63 // pred_check
          %p2177 = pneg %p216
        $region66: #{temporal_block.1} parent=63 // pred_check_branch
          %2179 = sbr.rel (%p2177) target = $region68
        $region67: #{temporal_block.1} parent=63 // pred_region
          %s2180 = sand.u32 %s201, 1
          %s2181 = scalar_lea.sflag [#allocation6], %s2180
          %s2182 = sand.u32 %s201, 1
          %s2183 = smul.addr %s2182, 32
          %s2184 = scalar_lea.vmem [#allocation7], %s2183
          %2185 = dma.done %s2181, 512
        $region68: #{temporal_block.1} parent=63 // pred_fallthru
          _
      $region64: #{temporal_block.1} parent=5 // pred_fallthru
        _
    $region6: #{temporal_block.1} parent=1 // loop_footer
      %s23 = sadd.s32 1, %s19
    $region7: #{temporal_block.1} parent=1 // loop_footer_branch
      %18 = sbr.rel target = $region3
    $region8: #{temporal_block.1} parent=1 // loop_exit
      _
    %2186 = vsyncpa [#allocation5], 1
    %s2187 = scalar_lea.sflag [#allocation5], 1
    %2188 = vsyncpa %s2187, 1
    %2189 = vsyncpa [#allocation6], 1
    %s2190 = scalar_lea.sflag [#allocation6], 1
    %2191 = vsyncpa %s2190, 1

</llo_original>
